<compile_context>
chip_gen: v5e
topology: v5e:2x2
jax: 0.10.0
libtpu: 0.0.40
codegen_flags: <defaults>
</compile_context>

<pallas_src>
import math

import jax
import jax.numpy as jnp
from jax.experimental import pallas as pl
from jax.experimental.pallas import tpu as pltpu

IN_FEATURES = 1024
OUT_FEATURES = 1024
HT_MIN = -10.0
HT_MAX = 10.0


def vert_gen_kernel(x_ref, wt_ref, b_ref, o_ref):
    """y[:, j-block] = hardtanh(x @ Wt[:, j-block] + b[j-block], -10, 10).

    x_ref:  (B, K)    activations (whole batch, full K; DMA'd once, reused)
    wt_ref: (K, tn)   pre-transposed weight column block (natural MXU RHS)
    b_ref:  (1, tn)   bias slice
    o_ref:  (B, tn)   output block (lane-dense store)
    """
    w = wt_ref[...]
    if w.dtype != jnp.float32:
        # bf16-streamed weight: single VPU upcast in VMEM; MXU accumulates f32.
        w = w.astype(jnp.float32)
    y = jnp.dot(x_ref[...], w, preferred_element_type=jnp.float32)
    y = y + b_ref[...]                      # bias broadcast over batch rows
    o_ref[...] = jnp.clip(y, HT_MIN, HT_MAX).astype(o_ref.dtype)


def _num_tensorcores():
    """TensorCores per chip: 1 on v5e/v6e, 2 on v7x (megacore)."""
    try:
        info = pltpu.get_tpu_info()
        for attr in ("num_cores", "num_tensorcores",
                     "tensor_cores_per_chip", "cores_per_chip"):
            n = getattr(info, attr, None)
            if n:
                return int(n)
    except Exception:
        pass
    try:  # fallback: device-kind sniff
        if "v7" in jax.devices()[0].device_kind.lower():
            return 2
    except Exception:
        pass
    return 1


def prepare_vert_generator_params(weight, bias, *, weight_dtype=None):
    """One-time parameter prep, amortized over all forward calls.

    weight: (out, in) f32 in PyTorch layout -> returned as (in, out) so the
            kernel never relayouts the weight per call.
    weight_dtype: optionally stream the weight in a narrower dtype
            (e.g. jnp.bfloat16) to halve the dominant HBM read.
    """
    assert weight.shape == (OUT_FEATURES, IN_FEATURES)
    wt = jnp.asarray(weight).T                                  # (K, N), done once
    if weight_dtype is not None:
        wt = wt.astype(weight_dtype)
    b2d = jnp.asarray(bias).reshape(1, OUT_FEATURES).astype(jnp.float32)
    return wt, b2d


def vert_generator_forward(x, wt, b2d, *, tn=None, core_parallel=None):
    """x: (B, 1024) f32; wt: (1024, 1024) pre-transposed weight; b2d: (1, 1024)."""
    B, K = x.shape
    K_w, N = wt.shape
    assert K == IN_FEATURES and K_w == IN_FEATURES and N == OUT_FEATURES
    assert b2d.shape == (1, N)

    n_cores = _num_tensorcores()
    if tn is None:
        # >=2 pipeline steps per TensorCore; blocks kept >=1 MiB so the
        # ~0.35 us/step grid overhead stays small vs. the per-block weight DMA.
        tn = 256 if n_cores > 1 else 512
    assert N % tn == 0 and tn % 128 == 0
    grid = (N // tn,)

    if core_parallel is None:
        core_parallel = n_cores > 1
    if core_parallel and hasattr(pltpu, "CORE_PARALLEL"):
        dim_sem = (pltpu.CORE_PARALLEL,)     # explicit dual-TC split on v7x
    else:
        dim_sem = ("parallel",)

    w_bytes = jnp.dtype(wt.dtype).itemsize
    x_bytes = jnp.dtype(x.dtype).itemsize
    cost = pl.CostEstimate(
        flops=2 * B * K * N,
        transcendentals=0,
        bytes_accessed=(N * K * w_bytes          # weight stream (dominant)
                        + B * K * x_bytes        # activations in
                        + N * 4                  # bias
                        + B * N * x_bytes),      # output
    )

    return pl.pallas_call(
        vert_gen_kernel,
        out_shape=jax.ShapeDtypeStruct((B, N), x.dtype),
        grid_spec=pltpu.PrefetchScalarGridSpec(
            num_scalar_prefetch=0,
            grid=grid,
            in_specs=[
                pl.BlockSpec((B, K), lambda j: (0, 0)),    # x: same block every step
                pl.BlockSpec((K, tn), lambda j: (0, j)),   # Wt column block
                pl.BlockSpec((1, tn), lambda j: (0, j)),   # bias slice
            ],
            out_specs=pl.BlockSpec((B, tn), lambda j: (0, j)),
        ),
        compiler_params=pltpu.CompilerParams(dimension_semantics=dim_sem),
        cost_estimate=cost,
    )(x, wt, b2d)


def reference_forward(x, weight, bias):
    y = x @ weight.T + bias
    return jnp.clip(y, HT_MIN, HT_MAX)


if __name__ == "__main__":
    key = jax.random.PRNGKey(0)
    kx, kw, kb = jax.random.split(key, 3)

    batch = 8
    # Deterministic synthetic parameters (PyTorch-like uniform init range).
    bound = 1.0 / math.sqrt(IN_FEATURES)
    weight = jax.random.uniform(
        kw, (OUT_FEATURES, IN_FEATURES), jnp.float32, -bound, bound
    )
    bias = jax.random.uniform(kb, (OUT_FEATURES,), jnp.float32, -bound, bound)
    # Scale inputs so Hardtanh clipping actually engages for some elements.
    x = 20.0 * jax.random.normal(kx, (batch, IN_FEATURES), jnp.float32)

    # ---- default (f32 weight) path: exact module semantics ----
    wt, b2d = prepare_vert_generator_params(weight, bias)
    out = jax.block_until_ready(vert_generator_forward(x, wt, b2d))
    ref = reference_forward(x, weight, bias)
    assert out.shape == (batch, OUT_FEATURES)
    assert jnp.allclose(out, ref, atol=1e-4, rtol=1e-4)

    # ---- optional bf16 weight streaming (halves the dominant HBM read) ----
    wt16, b2d16 = prepare_vert_generator_params(
        weight, bias, weight_dtype=jnp.bfloat16
    )
    out16 = jax.block_until_ready(vert_generator_forward(x, wt16, b2d16))
    ref16 = reference_forward(x, wt16.astype(jnp.float32).T, bias)  # bf16-aware ref
    assert jnp.allclose(out16, ref16, atol=1e-3, rtol=1e-3)

    print("KERNEL_OK")
</pallas_src>

<mosaic_0001>
module attributes {stable_mosaic.version = 11 : i64} {
  func.func @vert_gen_kernel(%arg0: i32, %arg1: memref<8x1024xf32, #tpu.memory_space<vmem>>, %arg2: memref<1024x512xf32, #tpu.memory_space<vmem>>, %arg3: memref<1x512xf32, #tpu.memory_space<vmem>>, %arg4: memref<8x512xf32, #tpu.memory_space<vmem>>) attributes {dimension_semantics = [#tpu.dimension_semantics<parallel>], iteration_bounds = array<i64: 2>, scalar_prefetch = 0 : i64, scratch_operands = 0 : i64, tpu.core_type = #tpu.core_type<tc>, window_params = [{pipeline_mode = #tpu.pipeline_mode<synchronous>, transform_indices = @transform_0, window_bounds = array<i64: 8, 1024>}, {transform_indices = @transform_1, window_bounds = array<i64: 1024, 512>}, {transform_indices = @transform_2, window_bounds = array<i64: 1, 512>}, {transform_indices = @transform_3, window_bounds = array<i64: 8, 512>}]} {
    %c0 = arith.constant 0 : index
    %c0_0 = arith.constant 0 : index
    %0 = vector.load %arg2[%c0, %c0_0] : memref<1024x512xf32, #tpu.memory_space<vmem>>, vector<1024x512xf32>
    %c0_1 = arith.constant 0 : index
    %c0_2 = arith.constant 0 : index
    %1 = vector.load %arg1[%c0_1, %c0_2] : memref<8x1024xf32, #tpu.memory_space<vmem>>, vector<8x1024xf32>
    %cst = arith.constant dense<0.000000e+00> : vector<8x512xf32>
    %2 = tpu.matmul %1, %0, %cst {dimension_numbers = #tpu.dot_dimension_numbers<[1], [0], [0], [1], [0, 0, 1, 1], [], []>} : vector<8x1024xf32>, vector<1024x512xf32>, vector<8x512xf32> -> vector<8x512xf32>
    %c0_3 = arith.constant 0 : index
    %c0_4 = arith.constant 0 : index
    %3 = vector.load %arg3[%c0_3, %c0_4] : memref<1x512xf32, #tpu.memory_space<vmem>>, vector<1x512xf32>
    %4 = vector.broadcast %3 : vector<1x512xf32> to vector<8x512xf32>
    %5 = arith.addf %2, %4 : vector<8x512xf32>
    %cst_5 = arith.constant -1.000000e+01 : f32
    %cst_6 = arith.constant 1.000000e+01 : f32
    %6 = vector.broadcast %cst_5 : f32 to vector<8x512xf32>
    %7 = arith.maximumf %6, %5 : vector<8x512xf32>
    %8 = vector.broadcast %cst_6 : f32 to vector<8x512xf32>
    %9 = arith.minimumf %8, %7 : vector<8x512xf32>
    %c0_7 = arith.constant 0 : index
    %c0_8 = arith.constant 0 : index
    %10 = vector.load %arg4[%c0_7, %c0_8] : memref<8x512xf32, #tpu.memory_space<vmem>>, vector<8x512xf32>
    tpu.vector_store %arg4[%c0_7, %c0_8], %9 {strides = array<i32>} : memref<8x512xf32, #tpu.memory_space<vmem>>, vector<8x512xf32>,
    return
  }
  func.func @transform_0(%arg0: i32) -> (i32, i32) {
    %c0_i32 = arith.constant 0 : i32
    %c0_i32_0 = arith.constant 0 : i32
    %c0_i32_1 = arith.constant 0 : i32
    return %c0_i32, %c0_i32_0 : i32, i32
  }
  func.func @transform_1(%arg0: i32) -> (i32, i32) {
    %c0_i32 = arith.constant 0 : i32
    %c0_i32_0 = arith.constant 0 : i32
    return %c0_i32, %arg0 : i32, i32
  }
  func.func @transform_2(%arg0: i32) -> (i32, i32) {
    %c0_i32 = arith.constant 0 : i32
    %c0_i32_0 = arith.constant 0 : i32
    return %c0_i32, %arg0 : i32, i32
  }
  func.func @transform_3(%arg0: i32) -> (i32, i32) {
    %c0_i32 = arith.constant 0 : i32
    %c0_i32_0 = arith.constant 0 : i32
    return %c0_i32, %arg0 : i32, i32
  }
}

</mosaic_0001>

<llo_original>
// kernel: tpu_custom_call.1
$region0: #{tpu_custom_call.1}
  #allocation0 [shape = 'u32[]', space=smem, size = 0x4, offset = 0x4, fixed_abs, tag = 'smem constant byte address 0x4 - core index']
  #allocation1 [shape = 'u32[72,128]{1,0:T(1,128)}', space=vmem, size = 0x9000, scoped, tag = 'internal scratch']
  %s0 = inlined_call_operand.hbm [shape: f32[8,1024], index: 0, kind: input, shape index: {}]
  %s1 = inlined_call_operand.hbm [shape: f32[1024,1024], index: 1, kind: input, shape index: {}]
  %s2 = inlined_call_operand.hbm [shape: f32[1,1024], index: 2, kind: input, shape index: {}]
  %s3 = inlined_call_operand.hbm [shape: f32[8,1024], index: 3, kind: output, shape index: {}]
  %s4 = sld [smem:[#allocation0]]
  $region57: #{tpu_custom_call.1} parent=0
    _
  %s6 = ssub.s32 1, %s4
  %s7 = scalar_select 0, %s6, %s4
  $region1: #{tpu_custom_call.1} parent=0
    #allocation2 [shape = 'u8[32768]{0}', space=vmem, size = 0x8000, scoped, tag = 'input window, operand 0, single buffered']
    #allocation3 [shape = 's32[2]{0}', space=sflag, size = 0x8, scoped, tag = 'scoped memory for tpu_custom_call.1']
    #allocation4 [shape = 's32[2]{0}', space=sflag, size = 0x8, scoped, tag = 'scoped memory for tpu_custom_call.1']
    #allocation5 [shape = 'u8[4194304]{0}', space=vmem, size = 0x400000, scoped, tag = 'input window, operand 1']
    #allocation6 [shape = 's32[2]{0}', space=sflag, size = 0x8, scoped, tag = 'scoped memory for tpu_custom_call.1']
    #allocation7 [shape = 'u8[4096]{0}', space=vmem, size = 0x1000, scoped, tag = 'input window, operand 2']
    #allocation8 [shape = 'u8[32768]{0}', space=vmem, size = 0x8000, scoped, tag = 'output window, operand 0']
    %8 = vsyncpa [#allocation3], 0
    %9 = vsyncpa [#allocation6], 0
    %s10 = scalar_lea.sflag [#allocation6], 1
    %11 = vsyncpa %s10, 0
    %12 = vsyncpa [#allocation4], 0
    %s13 = scalar_lea.sflag [#allocation4], 1
    %14 = vsyncpa %s13, 0
    loop: start=0, step=1, limit=4
    $region2: #{tpu_custom_call.1} parent=1 // loop_pre_header
      _
    $region3: #{tpu_custom_call.1} parent=1 // loop_header
      %s16 = sphi 0, %s20
      %p17 = scmp.ge.s32.totalorder %s16, 4
      %s24 = sphi 0, %s24
      %s26 = sphi 0, %s24
      %s27 = sphi 0, %s26
      %s41 = sphi 0, %s27
      %s47 = sphi 0, %s49
      %s50 = sphi 0, %s47
      %s51 = sphi 0, %s50
      %s67 = sphi 0, %s51
      %s73 = sphi 0, %s75
      %s76 = sphi 0, %s73
      %s77 = sphi 0, %s76
      %s93 = sphi 0, %s77
      %s99 = sphi 0, %s101
      %s102 = sphi 0, %s99
      %s103 = sphi 0, %s102
      %s119 = sphi 0, %s103
    $region4: #{tpu_custom_call.1} parent=1 // loop_header_branch
      %19 = sbr.rel (%p17) target = $region8
    $region5: #{tpu_custom_call.1} parent=1 // loop_body
      %s21 = ssub.s32 %s16, 1
      %s22 = ssub.s32 %s16, 2
      %s23 = sadd.s32 %s16, 1
      %s25 = sadd.s32 %s24, 1
      %p28 = scmp.eq.s32.totalorder %s16, 1
      %p29 = scmp.ne.s32.totalorder %s24, %s26
      %p30 = scmp.eq.s32.totalorder %s16, 0
      %p31 = por %p29, %p30
      %p32 = scmp.ne.s32.totalorder %s24, %s26
      %p33 = scmp.eq.s32.totalorder %s21, 1
      %p34 = por %p32, %p33
      %p35 = scmp.ne.s32.totalorder %s26, %s27
      %p36 = scmp.eq.s32.totalorder %s21, 0
      %p37 = por %p35, %p36
      %p38 = scmp.ne.s32.totalorder %s26, %s27
      %p39 = scmp.eq.s32.totalorder %s22, 1
      %p40 = por %p38, %p39
      %p42 = scmp.ne.s32.totalorder %s27, %s41
      %p43 = scmp.eq.s32.totalorder %s22, 0
      %p44 = por %p42, %p43
      %s45 = ssub.s32 %s16, %s23
      %p46 = scmp.eq.s32.totalorder %s45, 0
      %s48 = sadd.s32 %s47, 1
      %s49 = scalar_select %p46, %s47, %s48
      %p52 = pneg %p46
      %p53 = scmp.eq.s32.totalorder %s16, 1
      %p54 = por %p52, %p53
      %p55 = scmp.ne.s32.totalorder %s47, %s50
      %p56 = scmp.eq.s32.totalorder %s16, 0
      %p57 = por %p55, %p56
      %p58 = scmp.ne.s32.totalorder %s47, %s50
      %p59 = scmp.eq.s32.totalorder %s21, 1
      %p60 = por %p58, %p59
      %p61 = scmp.ne.s32.totalorder %s50, %s51
      %p62 = scmp.eq.s32.totalorder %s21, 0
      %p63 = por %p61, %p62
      %p64 = scmp.ne.s32.totalorder %s50, %s51
      %p65 = scmp.eq.s32.totalorder %s22, 1
      %p66 = por %p64, %p65
      %p68 = scmp.ne.s32.totalorder %s51, %s67
      %p69 = scmp.eq.s32.totalorder %s22, 0
      %p70 = por %p68, %p69
      %s71 = ssub.s32 %s16, %s23
      %p72 = scmp.eq.s32.totalorder %s71, 0
      %s74 = sadd.s32 %s73, 1
      %s75 = scalar_select %p72, %s73, %s74
      %p78 = pneg %p72
      %p79 = scmp.eq.s32.totalorder %s16, 1
      %p80 = por %p78, %p79
      %p81 = scmp.ne.s32.totalorder %s73, %s76
      %p82 = scmp.eq.s32.totalorder %s16, 0
      %p83 = por %p81, %p82
      %p84 = scmp.ne.s32.totalorder %s73, %s76
      %p85 = scmp.eq.s32.totalorder %s21, 1
      %p86 = por %p84, %p85
      %p87 = scmp.ne.s32.totalorder %s76, %s77
      %p88 = scmp.eq.s32.totalorder %s21, 0
      %p89 = por %p87, %p88
      %p90 = scmp.ne.s32.totalorder %s76, %s77
      %p91 = scmp.eq.s32.totalorder %s22, 1
      %p92 = por %p90, %p91
      %p94 = scmp.ne.s32.totalorder %s77, %s93
      %p95 = scmp.eq.s32.totalorder %s22, 0
      %p96 = por %p94, %p95
      %s97 = ssub.s32 %s16, %s23
      %p98 = scmp.eq.s32.totalorder %s97, 0
      %s100 = sadd.s32 %s99, 1
      %s101 = scalar_select %p98, %s99, %s100
      %p104 = pneg %p98
      %p105 = scmp.eq.s32.totalorder %s16, 1
      %p106 = por %p104, %p105
      %p107 = scmp.ne.s32.totalorder %s99, %s102
      %p108 = scmp.eq.s32.totalorder %s16, 0
      %p109 = por %p107, %p108
      %p110 = scmp.ne.s32.totalorder %s99, %s102
      %p111 = scmp.eq.s32.totalorder %s21, 1
      %p112 = por %p110, %p111
      %p113 = scmp.ne.s32.totalorder %s102, %s103
      %p114 = scmp.eq.s32.totalorder %s21, 0
      %p115 = por %p113, %p114
      %p116 = scmp.ne.s32.totalorder %s102, %s103
      %p117 = scmp.eq.s32.totalorder %s22, 1
      %p118 = por %p116, %p117
      %p120 = scmp.ne.s32.totalorder %s103, %s119
      %p121 = scmp.eq.s32.totalorder %s22, 0
      %p122 = por %p120, %p121
      %p123 = scmp.le.s32.totalorder 1, %s16
      %p124 = scmp.lt.s32.totalorder %s16, 3
      %p125 = pnand %p123, %p124
      %p126 = pneg %p125
      // Predicated region
      $region9: #{tpu_custom_call.1} parent=5 // pred_check
        _
      $region10: #{tpu_custom_call.1} parent=5 // pred_check_branch
        %128 = sbr.rel (%p125) target = $region12
      $region11: #{tpu_custom_call.1} parent=5 // pred_region
        %s129 = ssub.s32 %s16, 1
        // Predicated region
        $region13: #{tpu_custom_call.1} parent=11 // pred_check
          %p130 = pneg %p37
        $region14: #{tpu_custom_call.1} parent=11 // pred_check_branch
          %132 = sbr.rel (%p130) target = $region16
        $region15: #{tpu_custom_call.1} parent=11 // pred_region
          %134 = vsyncadd [#allocation3], 0
          %s136 = sshll.u32 %s0, 4
          %s137 = int_to_ptr.hbm [resolvable:$true] %s136
          %s138 = sshll.u32 [#allocation2], 4
          %s139 = int_to_ptr.vmem [resolvable:$true] %s138
          %141 = dma.hbm_to_vmem [thread:$0]  %s137, 1024, %s139, [#allocation3]
        $region16: #{tpu_custom_call.1} parent=11 // pred_fallthru
          _
      $region12: #{tpu_custom_call.1} parent=5 // pred_fallthru
        _
      %p142 = scmp.lt.s32.totalorder %s16, 2
      // Predicated region
      $region17: #{tpu_custom_call.1} parent=5 // pred_check
        %p143 = pneg %p142
      $region18: #{tpu_custom_call.1} parent=5 // pred_check_branch
        %145 = sbr.rel (%p143) target = $region20
      $region19: #{tpu_custom_call.1} parent=5 // pred_region
        // Predicated region
        $region21: #{tpu_custom_call.1} parent=19 // pred_check
          %p146 = pneg %p57
        $region22: #{tpu_custom_call.1} parent=19 // pred_check_branch
          %148 = sbr.rel (%p146) target = $region24
        $region23: #{tpu_custom_call.1} parent=19 // pred_region
          %s149 = sand.u32 %s16, 1
          %s150 = scalar_lea.sflag [#allocation6], %s149
          %s151 = sand.u32 %s47, 1
          %s152 = smul.addr %s151, 4096
          %s153 = scalar_lea.vmem [#allocation5], %s152
          %s154 = smul.u32 4, %s16
          %156 = vsyncadd %s150, 0
          %s157 = smul.addr %s154, 8
          %s158 = scalar_lea.hbm %s1, %s157
          %s159 = sshll.u32 %s158, 4
          %s160 = int_to_ptr.hbm [resolvable:$true] %s159
          %s161 = sshll.u32 %s153, 4
          %s162 = int_to_ptr.vmem [resolvable:$true] %s161
          %167 = dma.hbm_to_vmem [thread:$0]  %s160, 65536, %s162, %s150, 1024, 512, 32
        $region24: #{tpu_custom_call.1} parent=19 // pred_fallthru
          _
        // Predicated region
        $region25: #{tpu_custom_call.1} parent=19 // pred_check
          %p168 = pneg %p83
        $region26: #{tpu_custom_call.1} parent=19 // pred_check_branch
          %170 = sbr.rel (%p168) target = $region28
        $region27: #{tpu_custom_call.1} parent=19 // pred_region
          %s171 = sand.u32 %s16, 1
          %s172 = scalar_lea.sflag [#allocation6], %s171
          %s173 = sand.u32 %s73, 1
          %s174 = smul.addr %s173, 4
          %s175 = scalar_lea.vmem [#allocation7], %s174
          %s176 = smul.u32 4, %s16
          %178 = vsyncadd %s172, 0
          %s179 = scalar_lea.hbm %s2, %s176
          %s181 = sshll.u32 %s179, 4
          %s182 = int_to_ptr.hbm [resolvable:$true] %s181
          %s183 = sshll.u32 %s175, 4
          %s184 = int_to_ptr.vmem [resolvable:$true] %s183
          %186 = dma.hbm_to_vmem [thread:$0]  %s182, 64, %s184, %s172
        $region28: #{tpu_custom_call.1} parent=19 // pred_fallthru
          _
      $region20: #{tpu_custom_call.1} parent=5 // pred_fallthru
        _
      %p187 = scmp.le.s32.totalorder 1, %s16
      %p188 = scmp.lt.s32.totalorder %s16, 3
      %p189 = pnand %p187, %p188
      %p190 = pneg %p189
      // Predicated region
      $region29: #{tpu_custom_call.1} parent=5 // pred_check
        _
      $region30: #{tpu_custom_call.1} parent=5 // pred_check_branch
        %192 = sbr.rel (%p189) target = $region32
      $region31: #{tpu_custom_call.1} parent=5 // pred_region
        %s193 = ssub.s32 %s16, 1
        // Predicated region
        $region33: #{tpu_custom_call.1} parent=31 // pred_check
          %p194 = pneg %p37
        $region34: #{tpu_custom_call.1} parent=31 // pred_check_branch
          %196 = sbr.rel (%p194) target = $region36
        $region35: #{tpu_custom_call.1} parent=31 // pred_region
          %198 = dma.done [#allocation3], 1024
        $region36: #{tpu_custom_call.1} parent=31 // pred_fallthru
          _
        %s199 = sand.u32 %s21, 1
        %s200 = scalar_lea.sflag [#allocation6], %s199
        %s201 = sand.u32 %s50, 1
        %s202 = smul.addr %s201, 4096
        %s203 = scalar_lea.vmem [#allocation5], %s202
        // Predicated region
        $region37: #{tpu_custom_call.1} parent=31 // pred_check
          %p204 = pneg %p63
        $region38: #{tpu_custom_call.1} parent=31 // pred_check_branch
          %206 = sbr.rel (%p204) target = $region40
        $region39: #{tpu_custom_call.1} parent=31 // pred_region
          %208 = dma.done %s200, 65536
        $region40: #{tpu_custom_call.1} parent=31 // pred_fallthru
          _
        %s209 = sand.u32 %s21, 1
        %s210 = scalar_lea.sflag [#allocation6], %s209
        %s211 = sand.u32 %s76, 1
        %s212 = smul.addr %s211, 4
        %s213 = scalar_lea.vmem [#allocation7], %s212
        // Predicated region
        $region41: #{tpu_custom_call.1} parent=31 // pred_check
          %p214 = pneg %p89
        $region42: #{tpu_custom_call.1} parent=31 // pred_check_branch
          %216 = sbr.rel (%p214) target = $region44
        $region43: #{tpu_custom_call.1} parent=31 // pred_region
          %218 = dma.done %s210, 64
        $region44: #{tpu_custom_call.1} parent=31 // pred_fallthru
          _
        %p219 = pneg %p37
        %p220 = pneg %p34
        %s221 = sand.u32 %s21, 1
        %s222 = scalar_lea.sflag [#allocation6], %s221
        %s223 = sand.u32 %s50, 1
        %s224 = smul.addr %s223, 4096
        %s225 = scalar_lea.vmem [#allocation5], %s224
        %p226 = pneg %p63
        %p227 = pneg %p60
        %s228 = sand.u32 %s21, 1
        %s229 = scalar_lea.sflag [#allocation6], %s228
        %s230 = sand.u32 %s76, 1
        %s231 = smul.addr %s230, 4
        %s232 = scalar_lea.vmem [#allocation7], %s231
        %p233 = pneg %p89
        %p234 = pneg %p86
        %p235 = pneg %p115
        %p236 = pneg %p112
        %s237 = sand.u32 %s102, 1
        %s238 = scalar_lea.sflag [#allocation4], %s237
        %s239 = sand.u32 %s102, 1
        %s240 = smul.addr %s239, 32
        %s241 = scalar_lea.vmem [#allocation8], %s240
        %s242 = smul.u32 4, %s21
        %s243 = smul.u32 4, %s21
        %s244 = smul.u32 4, %s21
        %v245 = vld [vmem:[%s203] sm:$0xff]
        %v246 = vld [vmem:[%s203 + $0x8] sm:$0xff]
        %v247 = vld [vmem:[%s203 + $0x10] sm:$0xff]
        %v248 = vld [vmem:[%s203 + $0x18] sm:$0xff]
        %v249 = vld [vmem:[%s203 + $0x20] sm:$0xff]
        %v250 = vld [vmem:[%s203 + $0x28] sm:$0xff]
        %v251 = vld [vmem:[%s203 + $0x30] sm:$0xff]
        %v252 = vld [vmem:[%s203 + $0x38] sm:$0xff]
        %v253 = vld [vmem:[%s203 + $0x40] sm:$0xff]
        %v254 = vld [vmem:[%s203 + $0x48] sm:$0xff]
        %v255 = vld [vmem:[%s203 + $0x50] sm:$0xff]
        %v256 = vld [vmem:[%s203 + $0x58] sm:$0xff]
        %v257 = vld [vmem:[%s203 + $0x60] sm:$0xff]
        %v258 = vld [vmem:[%s203 + $0x68] sm:$0xff]
        %v259 = vld [vmem:[%s203 + $0x70] sm:$0xff]
        %v260 = vld [vmem:[%s203 + $0x78] sm:$0xff]
        %v261 = vld [vmem:[%s203 + $0x80] sm:$0xff]
        %v262 = vld [vmem:[%s203 + $0x88] sm:$0xff]
        %v263 = vld [vmem:[%s203 + $0x90] sm:$0xff]
        %v264 = vld [vmem:[%s203 + $0x98] sm:$0xff]
        %v265 = vld [vmem:[%s203 + $0xa0] sm:$0xff]
        %v266 = vld [vmem:[%s203 + $0xa8] sm:$0xff]
        %v267 = vld [vmem:[%s203 + $0xb0] sm:$0xff]
        %v268 = vld [vmem:[%s203 + $0xb8] sm:$0xff]
        %v269 = vld [vmem:[%s203 + $0xc0] sm:$0xff]
        %v270 = vld [vmem:[%s203 + $0xc8] sm:$0xff]
        %v271 = vld [vmem:[%s203 + $0xd0] sm:$0xff]
        %v272 = vld [vmem:[%s203 + $0xd8] sm:$0xff]
        %v273 = vld [vmem:[%s203 + $0xe0] sm:$0xff]
        %v274 = vld [vmem:[%s203 + $0xe8] sm:$0xff]
        %v275 = vld [vmem:[%s203 + $0xf0] sm:$0xff]
        %v276 = vld [vmem:[%s203 + $0xf8] sm:$0xff]
        %v277 = vld [vmem:[%s203 + $0x100] sm:$0xff]
        %v278 = vld [vmem:[%s203 + $0x108] sm:$0xff]
        %v279 = vld [vmem:[%s203 + $0x110] sm:$0xff]
        %v280 = vld [vmem:[%s203 + $0x118] sm:$0xff]
        %v281 = vld [vmem:[%s203 + $0x120] sm:$0xff]
        %v282 = vld [vmem:[%s203 + $0x128] sm:$0xff]
        %v283 = vld [vmem:[%s203 + $0x130] sm:$0xff]
        %v284 = vld [vmem:[%s203 + $0x138] sm:$0xff]
        %v285 = vld [vmem:[%s203 + $0x140] sm:$0xff]
        %v286 = vld [vmem:[%s203 + $0x148] sm:$0xff]
        %v287 = vld [vmem:[%s203 + $0x150] sm:$0xff]
        %v288 = vld [vmem:[%s203 + $0x158] sm:$0xff]
        %v289 = vld [vmem:[%s203 + $0x160] sm:$0xff]
        %v290 = vld [vmem:[%s203 + $0x168] sm:$0xff]
        %v291 = vld [vmem:[%s203 + $0x170] sm:$0xff]
        %v292 = vld [vmem:[%s203 + $0x178] sm:$0xff]
        %v293 = vld [vmem:[%s203 + $0x180] sm:$0xff]
        %v294 = vld [vmem:[%s203 + $0x188] sm:$0xff]
        %v295 = vld [vmem:[%s203 + $0x190] sm:$0xff]
        %v296 = vld [vmem:[%s203 + $0x198] sm:$0xff]
        %v297 = vld [vmem:[%s203 + $0x1a0] sm:$0xff]
        %v298 = vld [vmem:[%s203 + $0x1a8] sm:$0xff]
        %v299 = vld [vmem:[%s203 + $0x1b0] sm:$0xff]
        %v300 = vld [vmem:[%s203 + $0x1b8] sm:$0xff]
        %v301 = vld [vmem:[%s203 + $0x1c0] sm:$0xff]
        %v302 = vld [vmem:[%s203 + $0x1c8] sm:$0xff]
        %v303 = vld [vmem:[%s203 + $0x1d0] sm:$0xff]
        %v304 = vld [vmem:[%s203 + $0x1d8] sm:$0xff]
        %v305 = vld [vmem:[%s203 + $0x1e0] sm:$0xff]
        %v306 = vld [vmem:[%s203 + $0x1e8] sm:$0xff]
        %v307 = vld [vmem:[%s203 + $0x1f0] sm:$0xff]
        %v308 = vld [vmem:[%s203 + $0x1f8] sm:$0xff]
        %v309 = vld [vmem:[%s203 + $0x200] sm:$0xff]
        %v310 = vld [vmem:[%s203 + $0x208] sm:$0xff]
        %v311 = vld [vmem:[%s203 + $0x210] sm:$0xff]
        %v312 = vld [vmem:[%s203 + $0x218] sm:$0xff]
        %v313 = vld [vmem:[%s203 + $0x220] sm:$0xff]
        %v314 = vld [vmem:[%s203 + $0x228] sm:$0xff]
        %v315 = vld [vmem:[%s203 + $0x230] sm:$0xff]
        %v316 = vld [vmem:[%s203 + $0x238] sm:$0xff]
        %v317 = vld [vmem:[%s203 + $0x240] sm:$0xff]
        %v318 = vld [vmem:[%s203 + $0x248] sm:$0xff]
        %v319 = vld [vmem:[%s203 + $0x250] sm:$0xff]
        %v320 = vld [vmem:[%s203 + $0x258] sm:$0xff]
        %v321 = vld [vmem:[%s203 + $0x260] sm:$0xff]
        %v322 = vld [vmem:[%s203 + $0x268] sm:$0xff]
        %v323 = vld [vmem:[%s203 + $0x270] sm:$0xff]
        %v324 = vld [vmem:[%s203 + $0x278] sm:$0xff]
        %v325 = vld [vmem:[%s203 + $0x280] sm:$0xff]
        %v326 = vld [vmem:[%s203 + $0x288] sm:$0xff]
        %v327 = vld [vmem:[%s203 + $0x290] sm:$0xff]
        %v328 = vld [vmem:[%s203 + $0x298] sm:$0xff]
        %v329 = vld [vmem:[%s203 + $0x2a0] sm:$0xff]
        %v330 = vld [vmem:[%s203 + $0x2a8] sm:$0xff]
        %v331 = vld [vmem:[%s203 + $0x2b0] sm:$0xff]
        %v332 = vld [vmem:[%s203 + $0x2b8] sm:$0xff]
        %v333 = vld [vmem:[%s203 + $0x2c0] sm:$0xff]
        %v334 = vld [vmem:[%s203 + $0x2c8] sm:$0xff]
        %v335 = vld [vmem:[%s203 + $0x2d0] sm:$0xff]
        %v336 = vld [vmem:[%s203 + $0x2d8] sm:$0xff]
        %v337 = vld [vmem:[%s203 + $0x2e0] sm:$0xff]
        %v338 = vld [vmem:[%s203 + $0x2e8] sm:$0xff]
        %v339 = vld [vmem:[%s203 + $0x2f0] sm:$0xff]
        %v340 = vld [vmem:[%s203 + $0x2f8] sm:$0xff]
        %v341 = vld [vmem:[%s203 + $0x300] sm:$0xff]
        %v342 = vld [vmem:[%s203 + $0x308] sm:$0xff]
        %v343 = vld [vmem:[%s203 + $0x310] sm:$0xff]
        %v344 = vld [vmem:[%s203 + $0x318] sm:$0xff]
        %v345 = vld [vmem:[%s203 + $0x320] sm:$0xff]
        %v346 = vld [vmem:[%s203 + $0x328] sm:$0xff]
        %v347 = vld [vmem:[%s203 + $0x330] sm:$0xff]
        %v348 = vld [vmem:[%s203 + $0x338] sm:$0xff]
        %v349 = vld [vmem:[%s203 + $0x340] sm:$0xff]
        %v350 = vld [vmem:[%s203 + $0x348] sm:$0xff]
        %v351 = vld [vmem:[%s203 + $0x350] sm:$0xff]
        %v352 = vld [vmem:[%s203 + $0x358] sm:$0xff]
        %v353 = vld [vmem:[%s203 + $0x360] sm:$0xff]
        %v354 = vld [vmem:[%s203 + $0x368] sm:$0xff]
        %v355 = vld [vmem:[%s203 + $0x370] sm:$0xff]
        %v356 = vld [vmem:[%s203 + $0x378] sm:$0xff]
        %v357 = vld [vmem:[%s203 + $0x380] sm:$0xff]
        %v358 = vld [vmem:[%s203 + $0x388] sm:$0xff]
        %v359 = vld [vmem:[%s203 + $0x390] sm:$0xff]
        %v360 = vld [vmem:[%s203 + $0x398] sm:$0xff]
        %v361 = vld [vmem:[%s203 + $0x3a0] sm:$0xff]
        %v362 = vld [vmem:[%s203 + $0x3a8] sm:$0xff]
        %v363 = vld [vmem:[%s203 + $0x3b0] sm:$0xff]
        %v364 = vld [vmem:[%s203 + $0x3b8] sm:$0xff]
        %v365 = vld [vmem:[%s203 + $0x3c0] sm:$0xff]
        %v366 = vld [vmem:[%s203 + $0x3c8] sm:$0xff]
        %v367 = vld [vmem:[%s203 + $0x3d0] sm:$0xff]
        %v368 = vld [vmem:[%s203 + $0x3d8] sm:$0xff]
        %v369 = vld [vmem:[%s203 + $0x3e0] sm:$0xff]
        %v370 = vld [vmem:[%s203 + $0x3e8] sm:$0xff]
        %v371 = vld [vmem:[%s203 + $0x3f0] sm:$0xff]
        %v372 = vld [vmem:[%s203 + $0x3f8] sm:$0xff]
        %v373 = vld [vmem:[%s203 + $0x400] sm:$0xff]
        %v374 = vld [vmem:[%s203 + $0x408] sm:$0xff]
        %v375 = vld [vmem:[%s203 + $0x410] sm:$0xff]
        %v376 = vld [vmem:[%s203 + $0x418] sm:$0xff]
        %v377 = vld [vmem:[%s203 + $0x420] sm:$0xff]
        %v378 = vld [vmem:[%s203 + $0x428] sm:$0xff]
        %v379 = vld [vmem:[%s203 + $0x430] sm:$0xff]
        %v380 = vld [vmem:[%s203 + $0x438] sm:$0xff]
        %v381 = vld [vmem:[%s203 + $0x440] sm:$0xff]
        %v382 = vld [vmem:[%s203 + $0x448] sm:$0xff]
        %v383 = vld [vmem:[%s203 + $0x450] sm:$0xff]
        %v384 = vld [vmem:[%s203 + $0x458] sm:$0xff]
        %v385 = vld [vmem:[%s203 + $0x460] sm:$0xff]
        %v386 = vld [vmem:[%s203 + $0x468] sm:$0xff]
        %v387 = vld [vmem:[%s203 + $0x470] sm:$0xff]
        %v388 = vld [vmem:[%s203 + $0x478] sm:$0xff]
        %v389 = vld [vmem:[%s203 + $0x480] sm:$0xff]
        %v390 = vld [vmem:[%s203 + $0x488] sm:$0xff]
        %v391 = vld [vmem:[%s203 + $0x490] sm:$0xff]
        %v392 = vld [vmem:[%s203 + $0x498] sm:$0xff]
        %v393 = vld [vmem:[%s203 + $0x4a0] sm:$0xff]
        %v394 = vld [vmem:[%s203 + $0x4a8] sm:$0xff]
        %v395 = vld [vmem:[%s203 + $0x4b0] sm:$0xff]
        %v396 = vld [vmem:[%s203 + $0x4b8] sm:$0xff]
        %v397 = vld [vmem:[%s203 + $0x4c0] sm:$0xff]
        %v398 = vld [vmem:[%s203 + $0x4c8] sm:$0xff]
        %v399 = vld [vmem:[%s203 + $0x4d0] sm:$0xff]
        %v400 = vld [vmem:[%s203 + $0x4d8] sm:$0xff]
        %v401 = vld [vmem:[%s203 + $0x4e0] sm:$0xff]
        %v402 = vld [vmem:[%s203 + $0x4e8] sm:$0xff]
        %v403 = vld [vmem:[%s203 + $0x4f0] sm:$0xff]
        %v404 = vld [vmem:[%s203 + $0x4f8] sm:$0xff]
        %v405 = vld [vmem:[%s203 + $0x500] sm:$0xff]
        %v406 = vld [vmem:[%s203 + $0x508] sm:$0xff]
        %v407 = vld [vmem:[%s203 + $0x510] sm:$0xff]
        %v408 = vld [vmem:[%s203 + $0x518] sm:$0xff]
        %v409 = vld [vmem:[%s203 + $0x520] sm:$0xff]
        %v410 = vld [vmem:[%s203 + $0x528] sm:$0xff]
        %v411 = vld [vmem:[%s203 + $0x530] sm:$0xff]
        %v412 = vld [vmem:[%s203 + $0x538] sm:$0xff]
        %v413 = vld [vmem:[%s203 + $0x540] sm:$0xff]
        %v414 = vld [vmem:[%s203 + $0x548] sm:$0xff]
        %v415 = vld [vmem:[%s203 + $0x550] sm:$0xff]
        %v416 = vld [vmem:[%s203 + $0x558] sm:$0xff]
        %v417 = vld [vmem:[%s203 + $0x560] sm:$0xff]
        %v418 = vld [vmem:[%s203 + $0x568] sm:$0xff]
        %v419 = vld [vmem:[%s203 + $0x570] sm:$0xff]
        %v420 = vld [vmem:[%s203 + $0x578] sm:$0xff]
        %v421 = vld [vmem:[%s203 + $0x580] sm:$0xff]
        %v422 = vld [vmem:[%s203 + $0x588] sm:$0xff]
        %v423 = vld [vmem:[%s203 + $0x590] sm:$0xff]
        %v424 = vld [vmem:[%s203 + $0x598] sm:$0xff]
        %v425 = vld [vmem:[%s203 + $0x5a0] sm:$0xff]
        %v426 = vld [vmem:[%s203 + $0x5a8] sm:$0xff]
        %v427 = vld [vmem:[%s203 + $0x5b0] sm:$0xff]
        %v428 = vld [vmem:[%s203 + $0x5b8] sm:$0xff]
        %v429 = vld [vmem:[%s203 + $0x5c0] sm:$0xff]
        %v430 = vld [vmem:[%s203 + $0x5c8] sm:$0xff]
        %v431 = vld [vmem:[%s203 + $0x5d0] sm:$0xff]
        %v432 = vld [vmem:[%s203 + $0x5d8] sm:$0xff]
        %v433 = vld [vmem:[%s203 + $0x5e0] sm:$0xff]
        %v434 = vld [vmem:[%s203 + $0x5e8] sm:$0xff]
        %v435 = vld [vmem:[%s203 + $0x5f0] sm:$0xff]
        %v436 = vld [vmem:[%s203 + $0x5f8] sm:$0xff]
        %v437 = vld [vmem:[%s203 + $0x600] sm:$0xff]
        %v438 = vld [vmem:[%s203 + $0x608] sm:$0xff]
        %v439 = vld [vmem:[%s203 + $0x610] sm:$0xff]
        %v440 = vld [vmem:[%s203 + $0x618] sm:$0xff]
        %v441 = vld [vmem:[%s203 + $0x620] sm:$0xff]
        %v442 = vld [vmem:[%s203 + $0x628] sm:$0xff]
        %v443 = vld [vmem:[%s203 + $0x630] sm:$0xff]
        %v444 = vld [vmem:[%s203 + $0x638] sm:$0xff]
        %v445 = vld [vmem:[%s203 + $0x640] sm:$0xff]
        %v446 = vld [vmem:[%s203 + $0x648] sm:$0xff]
        %v447 = vld [vmem:[%s203 + $0x650] sm:$0xff]
        %v448 = vld [vmem:[%s203 + $0x658] sm:$0xff]
        %v449 = vld [vmem:[%s203 + $0x660] sm:$0xff]
        %v450 = vld [vmem:[%s203 + $0x668] sm:$0xff]
        %v451 = vld [vmem:[%s203 + $0x670] sm:$0xff]
        %v452 = vld [vmem:[%s203 + $0x678] sm:$0xff]
        %v453 = vld [vmem:[%s203 + $0x680] sm:$0xff]
        %v454 = vld [vmem:[%s203 + $0x688] sm:$0xff]
        %v455 = vld [vmem:[%s203 + $0x690] sm:$0xff]
        %v456 = vld [vmem:[%s203 + $0x698] sm:$0xff]
        %v457 = vld [vmem:[%s203 + $0x6a0] sm:$0xff]
        %v458 = vld [vmem:[%s203 + $0x6a8] sm:$0xff]
        %v459 = vld [vmem:[%s203 + $0x6b0] sm:$0xff]
        %v460 = vld [vmem:[%s203 + $0x6b8] sm:$0xff]
        %v461 = vld [vmem:[%s203 + $0x6c0] sm:$0xff]
        %v462 = vld [vmem:[%s203 + $0x6c8] sm:$0xff]
        %v463 = vld [vmem:[%s203 + $0x6d0] sm:$0xff]
        %v464 = vld [vmem:[%s203 + $0x6d8] sm:$0xff]
        %v465 = vld [vmem:[%s203 + $0x6e0] sm:$0xff]
        %v466 = vld [vmem:[%s203 + $0x6e8] sm:$0xff]
        %v467 = vld [vmem:[%s203 + $0x6f0] sm:$0xff]
        %v468 = vld [vmem:[%s203 + $0x6f8] sm:$0xff]
        %v469 = vld [vmem:[%s203 + $0x700] sm:$0xff]
        %v470 = vld [vmem:[%s203 + $0x708] sm:$0xff]
        %v471 = vld [vmem:[%s203 + $0x710] sm:$0xff]
        %v472 = vld [vmem:[%s203 + $0x718] sm:$0xff]
        %v473 = vld [vmem:[%s203 + $0x720] sm:$0xff]
        %v474 = vld [vmem:[%s203 + $0x728] sm:$0xff]
        %v475 = vld [vmem:[%s203 + $0x730] sm:$0xff]
        %v476 = vld [vmem:[%s203 + $0x738] sm:$0xff]
        %v477 = vld [vmem:[%s203 + $0x740] sm:$0xff]
        %v478 = vld [vmem:[%s203 + $0x748] sm:$0xff]
        %v479 = vld [vmem:[%s203 + $0x750] sm:$0xff]
        %v480 = vld [vmem:[%s203 + $0x758] sm:$0xff]
        %v481 = vld [vmem:[%s203 + $0x760] sm:$0xff]
        %v482 = vld [vmem:[%s203 + $0x768] sm:$0xff]
        %v483 = vld [vmem:[%s203 + $0x770] sm:$0xff]
        %v484 = vld [vmem:[%s203 + $0x778] sm:$0xff]
        %v485 = vld [vmem:[%s203 + $0x780] sm:$0xff]
        %v486 = vld [vmem:[%s203 + $0x788] sm:$0xff]
        %v487 = vld [vmem:[%s203 + $0x790] sm:$0xff]
        %v488 = vld [vmem:[%s203 + $0x798] sm:$0xff]
        %v489 = vld [vmem:[%s203 + $0x7a0] sm:$0xff]
        %v490 = vld [vmem:[%s203 + $0x7a8] sm:$0xff]
        %v491 = vld [vmem:[%s203 + $0x7b0] sm:$0xff]
        %v492 = vld [vmem:[%s203 + $0x7b8] sm:$0xff]
        %v493 = vld [vmem:[%s203 + $0x7c0] sm:$0xff]
        %v494 = vld [vmem:[%s203 + $0x7c8] sm:$0xff]
        %v495 = vld [vmem:[%s203 + $0x7d0] sm:$0xff]
        %v496 = vld [vmem:[%s203 + $0x7d8] sm:$0xff]
        %v497 = vld [vmem:[%s203 + $0x7e0] sm:$0xff]
        %v498 = vld [vmem:[%s203 + $0x7e8] sm:$0xff]
        %v499 = vld [vmem:[%s203 + $0x7f0] sm:$0xff]
        %v500 = vld [vmem:[%s203 + $0x7f8] sm:$0xff]
        %v501 = vld [vmem:[%s203 + $0x800] sm:$0xff]
        %v502 = vld [vmem:[%s203 + $0x808] sm:$0xff]
        %v503 = vld [vmem:[%s203 + $0x810] sm:$0xff]
        %v504 = vld [vmem:[%s203 + $0x818] sm:$0xff]
        %v505 = vld [vmem:[%s203 + $0x820] sm:$0xff]
        %v506 = vld [vmem:[%s203 + $0x828] sm:$0xff]
        %v507 = vld [vmem:[%s203 + $0x830] sm:$0xff]
        %v508 = vld [vmem:[%s203 + $0x838] sm:$0xff]
        %v509 = vld [vmem:[%s203 + $0x840] sm:$0xff]
        %v510 = vld [vmem:[%s203 + $0x848] sm:$0xff]
        %v511 = vld [vmem:[%s203 + $0x850] sm:$0xff]
        %v512 = vld [vmem:[%s203 + $0x858] sm:$0xff]
        %v513 = vld [vmem:[%s203 + $0x860] sm:$0xff]
        %v514 = vld [vmem:[%s203 + $0x868] sm:$0xff]
        %v515 = vld [vmem:[%s203 + $0x870] sm:$0xff]
        %v516 = vld [vmem:[%s203 + $0x878] sm:$0xff]
        %v517 = vld [vmem:[%s203 + $0x880] sm:$0xff]
        %v518 = vld [vmem:[%s203 + $0x888] sm:$0xff]
        %v519 = vld [vmem:[%s203 + $0x890] sm:$0xff]
        %v520 = vld [vmem:[%s203 + $0x898] sm:$0xff]
        %v521 = vld [vmem:[%s203 + $0x8a0] sm:$0xff]
        %v522 = vld [vmem:[%s203 + $0x8a8] sm:$0xff]
        %v523 = vld [vmem:[%s203 + $0x8b0] sm:$0xff]
        %v524 = vld [vmem:[%s203 + $0x8b8] sm:$0xff]
        %v525 = vld [vmem:[%s203 + $0x8c0] sm:$0xff]
        %v526 = vld [vmem:[%s203 + $0x8c8] sm:$0xff]
        %v527 = vld [vmem:[%s203 + $0x8d0] sm:$0xff]
        %v528 = vld [vmem:[%s203 + $0x8d8] sm:$0xff]
        %v529 = vld [vmem:[%s203 + $0x8e0] sm:$0xff]
        %v530 = vld [vmem:[%s203 + $0x8e8] sm:$0xff]
        %v531 = vld [vmem:[%s203 + $0x8f0] sm:$0xff]
        %v532 = vld [vmem:[%s203 + $0x8f8] sm:$0xff]
        %v533 = vld [vmem:[%s203 + $0x900] sm:$0xff]
        %v534 = vld [vmem:[%s203 + $0x908] sm:$0xff]
        %v535 = vld [vmem:[%s203 + $0x910] sm:$0xff]
        %v536 = vld [vmem:[%s203 + $0x918] sm:$0xff]
        %v537 = vld [vmem:[%s203 + $0x920] sm:$0xff]
        %v538 = vld [vmem:[%s203 + $0x928] sm:$0xff]
        %v539 = vld [vmem:[%s203 + $0x930] sm:$0xff]
        %v540 = vld [vmem:[%s203 + $0x938] sm:$0xff]
        %v541 = vld [vmem:[%s203 + $0x940] sm:$0xff]
        %v542 = vld [vmem:[%s203 + $0x948] sm:$0xff]
        %v543 = vld [vmem:[%s203 + $0x950] sm:$0xff]
        %v544 = vld [vmem:[%s203 + $0x958] sm:$0xff]
        %v545 = vld [vmem:[%s203 + $0x960] sm:$0xff]
        %v546 = vld [vmem:[%s203 + $0x968] sm:$0xff]
        %v547 = vld [vmem:[%s203 + $0x970] sm:$0xff]
        %v548 = vld [vmem:[%s203 + $0x978] sm:$0xff]
        %v549 = vld [vmem:[%s203 + $0x980] sm:$0xff]
        %v550 = vld [vmem:[%s203 + $0x988] sm:$0xff]
        %v551 = vld [vmem:[%s203 + $0x990] sm:$0xff]
        %v552 = vld [vmem:[%s203 + $0x998] sm:$0xff]
        %v553 = vld [vmem:[%s203 + $0x9a0] sm:$0xff]
        %v554 = vld [vmem:[%s203 + $0x9a8] sm:$0xff]
        %v555 = vld [vmem:[%s203 + $0x9b0] sm:$0xff]
        %v556 = vld [vmem:[%s203 + $0x9b8] sm:$0xff]
        %v557 = vld [vmem:[%s203 + $0x9c0] sm:$0xff]
        %v558 = vld [vmem:[%s203 + $0x9c8] sm:$0xff]
        %v559 = vld [vmem:[%s203 + $0x9d0] sm:$0xff]
        %v560 = vld [vmem:[%s203 + $0x9d8] sm:$0xff]
        %v561 = vld [vmem:[%s203 + $0x9e0] sm:$0xff]
        %v562 = vld [vmem:[%s203 + $0x9e8] sm:$0xff]
        %v563 = vld [vmem:[%s203 + $0x9f0] sm:$0xff]
        %v564 = vld [vmem:[%s203 + $0x9f8] sm:$0xff]
        %v565 = vld [vmem:[%s203 + $0xa00] sm:$0xff]
        %v566 = vld [vmem:[%s203 + $0xa08] sm:$0xff]
        %v567 = vld [vmem:[%s203 + $0xa10] sm:$0xff]
        %v568 = vld [vmem:[%s203 + $0xa18] sm:$0xff]
        %v569 = vld [vmem:[%s203 + $0xa20] sm:$0xff]
        %v570 = vld [vmem:[%s203 + $0xa28] sm:$0xff]
        %v571 = vld [vmem:[%s203 + $0xa30] sm:$0xff]
        %v572 = vld [vmem:[%s203 + $0xa38] sm:$0xff]
        %v573 = vld [vmem:[%s203 + $0xa40] sm:$0xff]
        %v574 = vld [vmem:[%s203 + $0xa48] sm:$0xff]
        %v575 = vld [vmem:[%s203 + $0xa50] sm:$0xff]
        %v576 = vld [vmem:[%s203 + $0xa58] sm:$0xff]
        %v577 = vld [vmem:[%s203 + $0xa60] sm:$0xff]
        %v578 = vld [vmem:[%s203 + $0xa68] sm:$0xff]
        %v579 = vld [vmem:[%s203 + $0xa70] sm:$0xff]
        %v580 = vld [vmem:[%s203 + $0xa78] sm:$0xff]
        %v581 = vld [vmem:[%s203 + $0xa80] sm:$0xff]
        %v582 = vld [vmem:[%s203 + $0xa88] sm:$0xff]
        %v583 = vld [vmem:[%s203 + $0xa90] sm:$0xff]
        %v584 = vld [vmem:[%s203 + $0xa98] sm:$0xff]
        %v585 = vld [vmem:[%s203 + $0xaa0] sm:$0xff]
        %v586 = vld [vmem:[%s203 + $0xaa8] sm:$0xff]
        %v587 = vld [vmem:[%s203 + $0xab0] sm:$0xff]
        %v588 = vld [vmem:[%s203 + $0xab8] sm:$0xff]
        %v589 = vld [vmem:[%s203 + $0xac0] sm:$0xff]
        %v590 = vld [vmem:[%s203 + $0xac8] sm:$0xff]
        %v591 = vld [vmem:[%s203 + $0xad0] sm:$0xff]
        %v592 = vld [vmem:[%s203 + $0xad8] sm:$0xff]
        %v593 = vld [vmem:[%s203 + $0xae0] sm:$0xff]
        %v594 = vld [vmem:[%s203 + $0xae8] sm:$0xff]
        %v595 = vld [vmem:[%s203 + $0xaf0] sm:$0xff]
        %v596 = vld [vmem:[%s203 + $0xaf8] sm:$0xff]
        %v597 = vld [vmem:[%s203 + $0xb00] sm:$0xff]
        %v598 = vld [vmem:[%s203 + $0xb08] sm:$0xff]
        %v599 = vld [vmem:[%s203 + $0xb10] sm:$0xff]
        %v600 = vld [vmem:[%s203 + $0xb18] sm:$0xff]
        %v601 = vld [vmem:[%s203 + $0xb20] sm:$0xff]
        %v602 = vld [vmem:[%s203 + $0xb28] sm:$0xff]
        %v603 = vld [vmem:[%s203 + $0xb30] sm:$0xff]
        %v604 = vld [vmem:[%s203 + $0xb38] sm:$0xff]
        %v605 = vld [vmem:[%s203 + $0xb40] sm:$0xff]
        %v606 = vld [vmem:[%s203 + $0xb48] sm:$0xff]
        %v607 = vld [vmem:[%s203 + $0xb50] sm:$0xff]
        %v608 = vld [vmem:[%s203 + $0xb58] sm:$0xff]
        %v609 = vld [vmem:[%s203 + $0xb60] sm:$0xff]
        %v610 = vld [vmem:[%s203 + $0xb68] sm:$0xff]
        %v611 = vld [vmem:[%s203 + $0xb70] sm:$0xff]
        %v612 = vld [vmem:[%s203 + $0xb78] sm:$0xff]
        %v613 = vld [vmem:[%s203 + $0xb80] sm:$0xff]
        %v614 = vld [vmem:[%s203 + $0xb88] sm:$0xff]
        %v615 = vld [vmem:[%s203 + $0xb90] sm:$0xff]
        %v616 = vld [vmem:[%s203 + $0xb98] sm:$0xff]
        %v617 = vld [vmem:[%s203 + $0xba0] sm:$0xff]
        %v618 = vld [vmem:[%s203 + $0xba8] sm:$0xff]
        %v619 = vld [vmem:[%s203 + $0xbb0] sm:$0xff]
        %v620 = vld [vmem:[%s203 + $0xbb8] sm:$0xff]
        %v621 = vld [vmem:[%s203 + $0xbc0] sm:$0xff]
        %v622 = vld [vmem:[%s203 + $0xbc8] sm:$0xff]
        %v623 = vld [vmem:[%s203 + $0xbd0] sm:$0xff]
        %v624 = vld [vmem:[%s203 + $0xbd8] sm:$0xff]
        %v625 = vld [vmem:[%s203 + $0xbe0] sm:$0xff]
        %v626 = vld [vmem:[%s203 + $0xbe8] sm:$0xff]
        %v627 = vld [vmem:[%s203 + $0xbf0] sm:$0xff]
        %v628 = vld [vmem:[%s203 + $0xbf8] sm:$0xff]
        %v629 = vld [vmem:[%s203 + $0xc00] sm:$0xff]
        %v630 = vld [vmem:[%s203 + $0xc08] sm:$0xff]
        %v631 = vld [vmem:[%s203 + $0xc10] sm:$0xff]
        %v632 = vld [vmem:[%s203 + $0xc18] sm:$0xff]
        %v633 = vld [vmem:[%s203 + $0xc20] sm:$0xff]
        %v634 = vld [vmem:[%s203 + $0xc28] sm:$0xff]
        %v635 = vld [vmem:[%s203 + $0xc30] sm:$0xff]
        %v636 = vld [vmem:[%s203 + $0xc38] sm:$0xff]
        %v637 = vld [vmem:[%s203 + $0xc40] sm:$0xff]
        %v638 = vld [vmem:[%s203 + $0xc48] sm:$0xff]
        %v639 = vld [vmem:[%s203 + $0xc50] sm:$0xff]
        %v640 = vld [vmem:[%s203 + $0xc58] sm:$0xff]
        %v641 = vld [vmem:[%s203 + $0xc60] sm:$0xff]
        %v642 = vld [vmem:[%s203 + $0xc68] sm:$0xff]
        %v643 = vld [vmem:[%s203 + $0xc70] sm:$0xff]
        %v644 = vld [vmem:[%s203 + $0xc78] sm:$0xff]
        %v645 = vld [vmem:[%s203 + $0xc80] sm:$0xff]
        %v646 = vld [vmem:[%s203 + $0xc88] sm:$0xff]
        %v647 = vld [vmem:[%s203 + $0xc90] sm:$0xff]
        %v648 = vld [vmem:[%s203 + $0xc98] sm:$0xff]
        %v649 = vld [vmem:[%s203 + $0xca0] sm:$0xff]
        %v650 = vld [vmem:[%s203 + $0xca8] sm:$0xff]
        %v651 = vld [vmem:[%s203 + $0xcb0] sm:$0xff]
        %v652 = vld [vmem:[%s203 + $0xcb8] sm:$0xff]
        %v653 = vld [vmem:[%s203 + $0xcc0] sm:$0xff]
        %v654 = vld [vmem:[%s203 + $0xcc8] sm:$0xff]
        %v655 = vld [vmem:[%s203 + $0xcd0] sm:$0xff]
        %v656 = vld [vmem:[%s203 + $0xcd8] sm:$0xff]
        %v657 = vld [vmem:[%s203 + $0xce0] sm:$0xff]
        %v658 = vld [vmem:[%s203 + $0xce8] sm:$0xff]
        %v659 = vld [vmem:[%s203 + $0xcf0] sm:$0xff]
        %v660 = vld [vmem:[%s203 + $0xcf8] sm:$0xff]
        %v661 = vld [vmem:[%s203 + $0xd00] sm:$0xff]
        %v662 = vld [vmem:[%s203 + $0xd08] sm:$0xff]
        %v663 = vld [vmem:[%s203 + $0xd10] sm:$0xff]
        %v664 = vld [vmem:[%s203 + $0xd18] sm:$0xff]
        %v665 = vld [vmem:[%s203 + $0xd20] sm:$0xff]
        %v666 = vld [vmem:[%s203 + $0xd28] sm:$0xff]
        %v667 = vld [vmem:[%s203 + $0xd30] sm:$0xff]
        %v668 = vld [vmem:[%s203 + $0xd38] sm:$0xff]
        %v669 = vld [vmem:[%s203 + $0xd40] sm:$0xff]
        %v670 = vld [vmem:[%s203 + $0xd48] sm:$0xff]
        %v671 = vld [vmem:[%s203 + $0xd50] sm:$0xff]
        %v672 = vld [vmem:[%s203 + $0xd58] sm:$0xff]
        %v673 = vld [vmem:[%s203 + $0xd60] sm:$0xff]
        %v674 = vld [vmem:[%s203 + $0xd68] sm:$0xff]
        %v675 = vld [vmem:[%s203 + $0xd70] sm:$0xff]
        %v676 = vld [vmem:[%s203 + $0xd78] sm:$0xff]
        %v677 = vld [vmem:[%s203 + $0xd80] sm:$0xff]
        %v678 = vld [vmem:[%s203 + $0xd88] sm:$0xff]
        %v679 = vld [vmem:[%s203 + $0xd90] sm:$0xff]
        %v680 = vld [vmem:[%s203 + $0xd98] sm:$0xff]
        %v681 = vld [vmem:[%s203 + $0xda0] sm:$0xff]
        %v682 = vld [vmem:[%s203 + $0xda8] sm:$0xff]
        %v683 = vld [vmem:[%s203 + $0xdb0] sm:$0xff]
        %v684 = vld [vmem:[%s203 + $0xdb8] sm:$0xff]
        %v685 = vld [vmem:[%s203 + $0xdc0] sm:$0xff]
        %v686 = vld [vmem:[%s203 + $0xdc8] sm:$0xff]
        %v687 = vld [vmem:[%s203 + $0xdd0] sm:$0xff]
        %v688 = vld [vmem:[%s203 + $0xdd8] sm:$0xff]
        %v689 = vld [vmem:[%s203 + $0xde0] sm:$0xff]
        %v690 = vld [vmem:[%s203 + $0xde8] sm:$0xff]
        %v691 = vld [vmem:[%s203 + $0xdf0] sm:$0xff]
        %v692 = vld [vmem:[%s203 + $0xdf8] sm:$0xff]
        %v693 = vld [vmem:[%s203 + $0xe00] sm:$0xff]
        %v694 = vld [vmem:[%s203 + $0xe08] sm:$0xff]
        %v695 = vld [vmem:[%s203 + $0xe10] sm:$0xff]
        %v696 = vld [vmem:[%s203 + $0xe18] sm:$0xff]
        %v697 = vld [vmem:[%s203 + $0xe20] sm:$0xff]
        %v698 = vld [vmem:[%s203 + $0xe28] sm:$0xff]
        %v699 = vld [vmem:[%s203 + $0xe30] sm:$0xff]
        %v700 = vld [vmem:[%s203 + $0xe38] sm:$0xff]
        %v701 = vld [vmem:[%s203 + $0xe40] sm:$0xff]
        %v702 = vld [vmem:[%s203 + $0xe48] sm:$0xff]
        %v703 = vld [vmem:[%s203 + $0xe50] sm:$0xff]
        %v704 = vld [vmem:[%s203 + $0xe58] sm:$0xff]
        %v705 = vld [vmem:[%s203 + $0xe60] sm:$0xff]
        %v706 = vld [vmem:[%s203 + $0xe68] sm:$0xff]
        %v707 = vld [vmem:[%s203 + $0xe70] sm:$0xff]
        %v708 = vld [vmem:[%s203 + $0xe78] sm:$0xff]
        %v709 = vld [vmem:[%s203 + $0xe80] sm:$0xff]
        %v710 = vld [vmem:[%s203 + $0xe88] sm:$0xff]
        %v711 = vld [vmem:[%s203 + $0xe90] sm:$0xff]
        %v712 = vld [vmem:[%s203 + $0xe98] sm:$0xff]
        %v713 = vld [vmem:[%s203 + $0xea0] sm:$0xff]
        %v714 = vld [vmem:[%s203 + $0xea8] sm:$0xff]
        %v715 = vld [vmem:[%s203 + $0xeb0] sm:$0xff]
        %v716 = vld [vmem:[%s203 + $0xeb8] sm:$0xff]
        %v717 = vld [vmem:[%s203 + $0xec0] sm:$0xff]
        %v718 = vld [vmem:[%s203 + $0xec8] sm:$0xff]
        %v719 = vld [vmem:[%s203 + $0xed0] sm:$0xff]
        %v720 = vld [vmem:[%s203 + $0xed8] sm:$0xff]
        %v721 = vld [vmem:[%s203 + $0xee0] sm:$0xff]
        %v722 = vld [vmem:[%s203 + $0xee8] sm:$0xff]
        %v723 = vld [vmem:[%s203 + $0xef0] sm:$0xff]
        %v724 = vld [vmem:[%s203 + $0xef8] sm:$0xff]
        %v725 = vld [vmem:[%s203 + $0xf00] sm:$0xff]
        %v726 = vld [vmem:[%s203 + $0xf08] sm:$0xff]
        %v727 = vld [vmem:[%s203 + $0xf10] sm:$0xff]
        %v728 = vld [vmem:[%s203 + $0xf18] sm:$0xff]
        %v729 = vld [vmem:[%s203 + $0xf20] sm:$0xff]
        %v730 = vld [vmem:[%s203 + $0xf28] sm:$0xff]
        %v731 = vld [vmem:[%s203 + $0xf30] sm:$0xff]
        %v732 = vld [vmem:[%s203 + $0xf38] sm:$0xff]
        %v733 = vld [vmem:[%s203 + $0xf40] sm:$0xff]
        %v734 = vld [vmem:[%s203 + $0xf48] sm:$0xff]
        %v735 = vld [vmem:[%s203 + $0xf50] sm:$0xff]
        %v736 = vld [vmem:[%s203 + $0xf58] sm:$0xff]
        %v737 = vld [vmem:[%s203 + $0xf60] sm:$0xff]
        %v738 = vld [vmem:[%s203 + $0xf68] sm:$0xff]
        %v739 = vld [vmem:[%s203 + $0xf70] sm:$0xff]
        %v740 = vld [vmem:[%s203 + $0xf78] sm:$0xff]
        %v741 = vld [vmem:[%s203 + $0xf80] sm:$0xff]
        %v742 = vld [vmem:[%s203 + $0xf88] sm:$0xff]
        %v743 = vld [vmem:[%s203 + $0xf90] sm:$0xff]
        %v744 = vld [vmem:[%s203 + $0xf98] sm:$0xff]
        %v745 = vld [vmem:[%s203 + $0xfa0] sm:$0xff]
        %v746 = vld [vmem:[%s203 + $0xfa8] sm:$0xff]
        %v747 = vld [vmem:[%s203 + $0xfb0] sm:$0xff]
        %v748 = vld [vmem:[%s203 + $0xfb8] sm:$0xff]
        %v749 = vld [vmem:[%s203 + $0xfc0] sm:$0xff]
        %v750 = vld [vmem:[%s203 + $0xfc8] sm:$0xff]
        %v751 = vld [vmem:[%s203 + $0xfd0] sm:$0xff]
        %v752 = vld [vmem:[%s203 + $0xfd8] sm:$0xff]
        %v753 = vld [vmem:[%s203 + $0xfe0] sm:$0xff]
        %v754 = vld [vmem:[%s203 + $0xfe8] sm:$0xff]
        %v755 = vld [vmem:[%s203 + $0xff0] sm:$0xff]
        %v756 = vld [vmem:[%s203 + $0xff8] sm:$0xff]
        %v757 = vld [vmem:[#allocation2] sm:$0xff]
        %v758 = vld [vmem:[#allocation2 + $0x8] sm:$0xff]
        %v759 = vld [vmem:[#allocation2 + $0x10] sm:$0xff]
        %v760 = vld [vmem:[#allocation2 + $0x18] sm:$0xff]
        %v761 = vld [vmem:[#allocation2 + $0x20] sm:$0xff]
        %v762 = vld [vmem:[#allocation2 + $0x28] sm:$0xff]
        %v763 = vld [vmem:[#allocation2 + $0x30] sm:$0xff]
        %v764 = vld [vmem:[#allocation2 + $0x38] sm:$0xff]
        %v765 = vld [vmem:[%s213] sm:$0xf]
        %v767 = vperm.slane %v765, 0
        %v768 = vperm.slane %v765, 1
        %v769 = vperm.slane %v765, 2
        %v770 = vperm.slane %v765, 3
        %775 = vmatpush.msra.mxu0 %v305
        %776 = vmatpush.msra.mxu0 %v301
        %777 = vmatpush.msra.mxu0 %v297
        %778 = vmatpush.msra.mxu0 %v293
        %779 = vmatpush.msra.mxu0 %v289
        %780 = vmatpush.msra.mxu0 %v285
        %781 = vmatpush.msra.mxu0 %v281
        %782 = vmatpush.msra.mxu0 %v277
        %783 = vmatpush.msra.mxu0 %v273
        %784 = vmatpush.msra.mxu0 %v269
        %785 = vmatpush.msra.mxu0 %v265
        %786 = vmatpush.msra.mxu0 %v261
        %787 = vmatpush.msra.mxu0 %v257
        %788 = vmatpush.msra.mxu0 %v253
        %789 = vmatpush.msra.mxu0 %v249
        %790 = vmatpush.msra.mxu0 %v245
        %791 = vmatmul.f32.gmra.mxu0 %v757
        %v792 = vpop.f32.mrf.mxu0
        %v793 = vadd.f32 %v767, %v792
        %794 = vdwg.mxu0
        %795 = vmatpush.msra.mxu0 %v369
        %796 = vmatpush.msra.mxu0 %v365
        %797 = vmatpush.msra.mxu0 %v361
        %798 = vmatpush.msra.mxu0 %v357
        %799 = vmatpush.msra.mxu0 %v353
        %800 = vmatpush.msra.mxu0 %v349
        %801 = vmatpush.msra.mxu0 %v345
        %802 = vmatpush.msra.mxu0 %v341
        %803 = vmatpush.msra.mxu0 %v337
        %804 = vmatpush.msra.mxu0 %v333
        %805 = vmatpush.msra.mxu0 %v329
        %806 = vmatpush.msra.mxu0 %v325
        %807 = vmatpush.msra.mxu0 %v321
        %808 = vmatpush.msra.mxu0 %v317
        %809 = vmatpush.msra.mxu0 %v313
        %810 = vmatpush.msra.mxu0 %v309
        %811 = vmatmul.f32.gmra.mxu0 %v758
        %v812 = vpop.f32.mrf.mxu0
        %v813 = vadd.f32 %v793, %v812
        %814 = vdwg.mxu0
        %815 = vmatpush.msra.mxu0 %v433
        %816 = vmatpush.msra.mxu0 %v429
        %817 = vmatpush.msra.mxu0 %v425
        %818 = vmatpush.msra.mxu0 %v421
        %819 = vmatpush.msra.mxu0 %v417
        %820 = vmatpush.msra.mxu0 %v413
        %821 = vmatpush.msra.mxu0 %v409
        %822 = vmatpush.msra.mxu0 %v405
        %823 = vmatpush.msra.mxu0 %v401
        %824 = vmatpush.msra.mxu0 %v397
        %825 = vmatpush.msra.mxu0 %v393
        %826 = vmatpush.msra.mxu0 %v389
        %827 = vmatpush.msra.mxu0 %v385
        %828 = vmatpush.msra.mxu0 %v381
        %829 = vmatpush.msra.mxu0 %v377
        %830 = vmatpush.msra.mxu0 %v373
        %831 = vmatmul.f32.gmra.mxu0 %v759
        %v832 = vpop.f32.mrf.mxu0
        %v833 = vadd.f32 %v813, %v832
        %834 = vdwg.mxu0
        %835 = vmatpush.msra.mxu0 %v497
        %836 = vmatpush.msra.mxu0 %v493
        %837 = vmatpush.msra.mxu0 %v489
        %838 = vmatpush.msra.mxu0 %v485
        %839 = vmatpush.msra.mxu0 %v481
        %840 = vmatpush.msra.mxu0 %v477
        %841 = vmatpush.msra.mxu0 %v473
        %842 = vmatpush.msra.mxu0 %v469
        %843 = vmatpush.msra.mxu0 %v465
        %844 = vmatpush.msra.mxu0 %v461
        %845 = vmatpush.msra.mxu0 %v457
        %846 = vmatpush.msra.mxu0 %v453
        %847 = vmatpush.msra.mxu0 %v449
        %848 = vmatpush.msra.mxu0 %v445
        %849 = vmatpush.msra.mxu0 %v441
        %850 = vmatpush.msra.mxu0 %v437
        %851 = vmatmul.f32.gmra.mxu0 %v760
        %v852 = vpop.f32.mrf.mxu0
        %v853 = vadd.f32 %v833, %v852
        %854 = vdwg.mxu0
        %855 = vmatpush.msra.mxu0 %v561
        %856 = vmatpush.msra.mxu0 %v557
        %857 = vmatpush.msra.mxu0 %v553
        %858 = vmatpush.msra.mxu0 %v549
        %859 = vmatpush.msra.mxu0 %v545
        %860 = vmatpush.msra.mxu0 %v541
        %861 = vmatpush.msra.mxu0 %v537
        %862 = vmatpush.msra.mxu0 %v533
        %863 = vmatpush.msra.mxu0 %v529
        %864 = vmatpush.msra.mxu0 %v525
        %865 = vmatpush.msra.mxu0 %v521
        %866 = vmatpush.msra.mxu0 %v517
        %867 = vmatpush.msra.mxu0 %v513
        %868 = vmatpush.msra.mxu0 %v509
        %869 = vmatpush.msra.mxu0 %v505
        %870 = vmatpush.msra.mxu0 %v501
        %871 = vmatmul.f32.gmra.mxu0 %v761
        %v872 = vpop.f32.mrf.mxu0
        %v873 = vadd.f32 %v853, %v872
        %874 = vdwg.mxu0
        %875 = vmatpush.msra.mxu0 %v625
        %876 = vmatpush.msra.mxu0 %v621
        %877 = vmatpush.msra.mxu0 %v617
        %878 = vmatpush.msra.mxu0 %v613
        %879 = vmatpush.msra.mxu0 %v609
        %880 = vmatpush.msra.mxu0 %v605
        %881 = vmatpush.msra.mxu0 %v601
        %882 = vmatpush.msra.mxu0 %v597
        %883 = vmatpush.msra.mxu0 %v593
        %884 = vmatpush.msra.mxu0 %v589
        %885 = vmatpush.msra.mxu0 %v585
        %886 = vmatpush.msra.mxu0 %v581
        %887 = vmatpush.msra.mxu0 %v577
        %888 = vmatpush.msra.mxu0 %v573
        %889 = vmatpush.msra.mxu0 %v569
        %890 = vmatpush.msra.mxu0 %v565
        %891 = vmatmul.f32.gmra.mxu0 %v762
        %v892 = vpop.f32.mrf.mxu0
        %v893 = vadd.f32 %v873, %v892
        %894 = vdwg.mxu0
        %895 = vmatpush.msra.mxu0 %v689
        %896 = vmatpush.msra.mxu0 %v685
        %897 = vmatpush.msra.mxu0 %v681
        %898 = vmatpush.msra.mxu0 %v677
        %899 = vmatpush.msra.mxu0 %v673
        %900 = vmatpush.msra.mxu0 %v669
        %901 = vmatpush.msra.mxu0 %v665
        %902 = vmatpush.msra.mxu0 %v661
        %903 = vmatpush.msra.mxu0 %v657
        %904 = vmatpush.msra.mxu0 %v653
        %905 = vmatpush.msra.mxu0 %v649
        %906 = vmatpush.msra.mxu0 %v645
        %907 = vmatpush.msra.mxu0 %v641
        %908 = vmatpush.msra.mxu0 %v637
        %909 = vmatpush.msra.mxu0 %v633
        %910 = vmatpush.msra.mxu0 %v629
        %911 = vmatmul.f32.gmra.mxu0 %v763
        %v912 = vpop.f32.mrf.mxu0
        %v913 = vadd.f32 %v893, %v912
        %914 = vdwg.mxu0
        %915 = vmatpush.msra.mxu0 %v753
        %916 = vmatpush.msra.mxu0 %v749
        %917 = vmatpush.msra.mxu0 %v745
        %918 = vmatpush.msra.mxu0 %v741
        %919 = vmatpush.msra.mxu0 %v737
        %920 = vmatpush.msra.mxu0 %v733
        %921 = vmatpush.msra.mxu0 %v729
        %922 = vmatpush.msra.mxu0 %v725
        %923 = vmatpush.msra.mxu0 %v721
        %924 = vmatpush.msra.mxu0 %v717
        %925 = vmatpush.msra.mxu0 %v713
        %926 = vmatpush.msra.mxu0 %v709
        %927 = vmatpush.msra.mxu0 %v705
        %928 = vmatpush.msra.mxu0 %v701
        %929 = vmatpush.msra.mxu0 %v697
        %930 = vmatpush.msra.mxu0 %v693
        %931 = vmatmul.f32.gmra.mxu0 %v764
        %v932 = vpop.f32.mrf.mxu0
        %v933 = vadd.f32 %v913, %v932
        %934 = vdwg.mxu0
        %935 = vmatpush.msra.mxu0 %v306
        %936 = vmatpush.msra.mxu0 %v302
        %937 = vmatpush.msra.mxu0 %v298
        %938 = vmatpush.msra.mxu0 %v294
        %939 = vmatpush.msra.mxu0 %v290
        %940 = vmatpush.msra.mxu0 %v286
        %941 = vmatpush.msra.mxu0 %v282
        %942 = vmatpush.msra.mxu0 %v278
        %943 = vmatpush.msra.mxu0 %v274
        %944 = vmatpush.msra.mxu0 %v270
        %945 = vmatpush.msra.mxu0 %v266
        %946 = vmatpush.msra.mxu0 %v262
        %947 = vmatpush.msra.mxu0 %v258
        %948 = vmatpush.msra.mxu0 %v254
        %949 = vmatpush.msra.mxu0 %v250
        %950 = vmatpush.msra.mxu0 %v246
        %951 = vmatmul.f32.gmra.mxu0 %v757
        %v952 = vpop.f32.mrf.mxu0
        %v953 = vadd.f32 %v768, %v952
        %954 = vdwg.mxu0
        %955 = vmatpush.msra.mxu0 %v370
        %956 = vmatpush.msra.mxu0 %v366
        %957 = vmatpush.msra.mxu0 %v362
        %958 = vmatpush.msra.mxu0 %v358
        %959 = vmatpush.msra.mxu0 %v354
        %960 = vmatpush.msra.mxu0 %v350
        %961 = vmatpush.msra.mxu0 %v346
        %962 = vmatpush.msra.mxu0 %v342
        %963 = vmatpush.msra.mxu0 %v338
        %964 = vmatpush.msra.mxu0 %v334
        %965 = vmatpush.msra.mxu0 %v330
        %966 = vmatpush.msra.mxu0 %v326
        %967 = vmatpush.msra.mxu0 %v322
        %968 = vmatpush.msra.mxu0 %v318
        %969 = vmatpush.msra.mxu0 %v314
        %970 = vmatpush.msra.mxu0 %v310
        %971 = vmatmul.f32.gmra.mxu0 %v758
        %v972 = vpop.f32.mrf.mxu0
        %v973 = vadd.f32 %v953, %v972
        %974 = vdwg.mxu0
        %975 = vmatpush.msra.mxu0 %v434
        %976 = vmatpush.msra.mxu0 %v430
        %977 = vmatpush.msra.mxu0 %v426
        %978 = vmatpush.msra.mxu0 %v422
        %979 = vmatpush.msra.mxu0 %v418
        %980 = vmatpush.msra.mxu0 %v414
        %981 = vmatpush.msra.mxu0 %v410
        %982 = vmatpush.msra.mxu0 %v406
        %983 = vmatpush.msra.mxu0 %v402
        %984 = vmatpush.msra.mxu0 %v398
        %985 = vmatpush.msra.mxu0 %v394
        %986 = vmatpush.msra.mxu0 %v390
        %987 = vmatpush.msra.mxu0 %v386
        %988 = vmatpush.msra.mxu0 %v382
        %989 = vmatpush.msra.mxu0 %v378
        %990 = vmatpush.msra.mxu0 %v374
        %991 = vmatmul.f32.gmra.mxu0 %v759
        %v992 = vpop.f32.mrf.mxu0
        %v993 = vadd.f32 %v973, %v992
        %994 = vdwg.mxu0
        %995 = vmatpush.msra.mxu0 %v498
        %996 = vmatpush.msra.mxu0 %v494
        %997 = vmatpush.msra.mxu0 %v490
        %998 = vmatpush.msra.mxu0 %v486
        %999 = vmatpush.msra.mxu0 %v482
        %1000 = vmatpush.msra.mxu0 %v478
        %1001 = vmatpush.msra.mxu0 %v474
        %1002 = vmatpush.msra.mxu0 %v470
        %1003 = vmatpush.msra.mxu0 %v466
        %1004 = vmatpush.msra.mxu0 %v462
        %1005 = vmatpush.msra.mxu0 %v458
        %1006 = vmatpush.msra.mxu0 %v454
        %1007 = vmatpush.msra.mxu0 %v450
        %1008 = vmatpush.msra.mxu0 %v446
        %1009 = vmatpush.msra.mxu0 %v442
        %1010 = vmatpush.msra.mxu0 %v438
        %1011 = vmatmul.f32.gmra.mxu0 %v760
        %v1012 = vpop.f32.mrf.mxu0
        %v1013 = vadd.f32 %v993, %v1012
        %1014 = vdwg.mxu0
        %1015 = vmatpush.msra.mxu0 %v562
        %1016 = vmatpush.msra.mxu0 %v558
        %1017 = vmatpush.msra.mxu0 %v554
        %1018 = vmatpush.msra.mxu0 %v550
        %1019 = vmatpush.msra.mxu0 %v546
        %1020 = vmatpush.msra.mxu0 %v542
        %1021 = vmatpush.msra.mxu0 %v538
        %1022 = vmatpush.msra.mxu0 %v534
        %1023 = vmatpush.msra.mxu0 %v530
        %1024 = vmatpush.msra.mxu0 %v526
        %1025 = vmatpush.msra.mxu0 %v522
        %1026 = vmatpush.msra.mxu0 %v518
        %1027 = vmatpush.msra.mxu0 %v514
        %1028 = vmatpush.msra.mxu0 %v510
        %1029 = vmatpush.msra.mxu0 %v506
        %1030 = vmatpush.msra.mxu0 %v502
        %1031 = vmatmul.f32.gmra.mxu0 %v761
        %v1032 = vpop.f32.mrf.mxu0
        %v1033 = vadd.f32 %v1013, %v1032
        %1034 = vdwg.mxu0
        %1035 = vmatpush.msra.mxu0 %v626
        %1036 = vmatpush.msra.mxu0 %v622
        %1037 = vmatpush.msra.mxu0 %v618
        %1038 = vmatpush.msra.mxu0 %v614
        %1039 = vmatpush.msra.mxu0 %v610
        %1040 = vmatpush.msra.mxu0 %v606
        %1041 = vmatpush.msra.mxu0 %v602
        %1042 = vmatpush.msra.mxu0 %v598
        %1043 = vmatpush.msra.mxu0 %v594
        %1044 = vmatpush.msra.mxu0 %v590
        %1045 = vmatpush.msra.mxu0 %v586
        %1046 = vmatpush.msra.mxu0 %v582
        %1047 = vmatpush.msra.mxu0 %v578
        %1048 = vmatpush.msra.mxu0 %v574
        %1049 = vmatpush.msra.mxu0 %v570
        %1050 = vmatpush.msra.mxu0 %v566
        %1051 = vmatmul.f32.gmra.mxu0 %v762
        %v1052 = vpop.f32.mrf.mxu0
        %v1053 = vadd.f32 %v1033, %v1052
        %1054 = vdwg.mxu0
        %1055 = vmatpush.msra.mxu0 %v690
        %1056 = vmatpush.msra.mxu0 %v686
        %1057 = vmatpush.msra.mxu0 %v682
        %1058 = vmatpush.msra.mxu0 %v678
        %1059 = vmatpush.msra.mxu0 %v674
        %1060 = vmatpush.msra.mxu0 %v670
        %1061 = vmatpush.msra.mxu0 %v666
        %1062 = vmatpush.msra.mxu0 %v662
        %1063 = vmatpush.msra.mxu0 %v658
        %1064 = vmatpush.msra.mxu0 %v654
        %1065 = vmatpush.msra.mxu0 %v650
        %1066 = vmatpush.msra.mxu0 %v646
        %1067 = vmatpush.msra.mxu0 %v642
        %1068 = vmatpush.msra.mxu0 %v638
        %1069 = vmatpush.msra.mxu0 %v634
        %1070 = vmatpush.msra.mxu0 %v630
        %1071 = vmatmul.f32.gmra.mxu0 %v763
        %v1072 = vpop.f32.mrf.mxu0
        %v1073 = vadd.f32 %v1053, %v1072
        %1074 = vdwg.mxu0
        %1075 = vmatpush.msra.mxu0 %v754
        %1076 = vmatpush.msra.mxu0 %v750
        %1077 = vmatpush.msra.mxu0 %v746
        %1078 = vmatpush.msra.mxu0 %v742
        %1079 = vmatpush.msra.mxu0 %v738
        %1080 = vmatpush.msra.mxu0 %v734
        %1081 = vmatpush.msra.mxu0 %v730
        %1082 = vmatpush.msra.mxu0 %v726
        %1083 = vmatpush.msra.mxu0 %v722
        %1084 = vmatpush.msra.mxu0 %v718
        %1085 = vmatpush.msra.mxu0 %v714
        %1086 = vmatpush.msra.mxu0 %v710
        %1087 = vmatpush.msra.mxu0 %v706
        %1088 = vmatpush.msra.mxu0 %v702
        %1089 = vmatpush.msra.mxu0 %v698
        %1090 = vmatpush.msra.mxu0 %v694
        %1091 = vmatmul.f32.gmra.mxu0 %v764
        %v1092 = vpop.f32.mrf.mxu0
        %v1093 = vadd.f32 %v1073, %v1092
        %1094 = vdwg.mxu0
        %1095 = vmatpush.msra.mxu0 %v307
        %1096 = vmatpush.msra.mxu0 %v303
        %1097 = vmatpush.msra.mxu0 %v299
        %1098 = vmatpush.msra.mxu0 %v295
        %1099 = vmatpush.msra.mxu0 %v291
        %1100 = vmatpush.msra.mxu0 %v287
        %1101 = vmatpush.msra.mxu0 %v283
        %1102 = vmatpush.msra.mxu0 %v279
        %1103 = vmatpush.msra.mxu0 %v275
        %1104 = vmatpush.msra.mxu0 %v271
        %1105 = vmatpush.msra.mxu0 %v267
        %1106 = vmatpush.msra.mxu0 %v263
        %1107 = vmatpush.msra.mxu0 %v259
        %1108 = vmatpush.msra.mxu0 %v255
        %1109 = vmatpush.msra.mxu0 %v251
        %1110 = vmatpush.msra.mxu0 %v247
        %1111 = vmatmul.f32.gmra.mxu0 %v757
        %v1112 = vpop.f32.mrf.mxu0
        %v1113 = vadd.f32 %v769, %v1112
        %1114 = vdwg.mxu0
        %1115 = vmatpush.msra.mxu0 %v371
        %1116 = vmatpush.msra.mxu0 %v367
        %1117 = vmatpush.msra.mxu0 %v363
        %1118 = vmatpush.msra.mxu0 %v359
        %1119 = vmatpush.msra.mxu0 %v355
        %1120 = vmatpush.msra.mxu0 %v351
        %1121 = vmatpush.msra.mxu0 %v347
        %1122 = vmatpush.msra.mxu0 %v343
        %1123 = vmatpush.msra.mxu0 %v339
        %1124 = vmatpush.msra.mxu0 %v335
        %1125 = vmatpush.msra.mxu0 %v331
        %1126 = vmatpush.msra.mxu0 %v327
        %1127 = vmatpush.msra.mxu0 %v323
        %1128 = vmatpush.msra.mxu0 %v319
        %1129 = vmatpush.msra.mxu0 %v315
        %1130 = vmatpush.msra.mxu0 %v311
        %1131 = vmatmul.f32.gmra.mxu0 %v758
        %v1132 = vpop.f32.mrf.mxu0
        %v1133 = vadd.f32 %v1113, %v1132
        %1134 = vdwg.mxu0
        %1135 = vmatpush.msra.mxu0 %v435
        %1136 = vmatpush.msra.mxu0 %v431
        %1137 = vmatpush.msra.mxu0 %v427
        %1138 = vmatpush.msra.mxu0 %v423
        %1139 = vmatpush.msra.mxu0 %v419
        %1140 = vmatpush.msra.mxu0 %v415
        %1141 = vmatpush.msra.mxu0 %v411
        %1142 = vmatpush.msra.mxu0 %v407
        %1143 = vmatpush.msra.mxu0 %v403
        %1144 = vmatpush.msra.mxu0 %v399
        %1145 = vmatpush.msra.mxu0 %v395
        %1146 = vmatpush.msra.mxu0 %v391
        %1147 = vmatpush.msra.mxu0 %v387
        %1148 = vmatpush.msra.mxu0 %v383
        %1149 = vmatpush.msra.mxu0 %v379
        %1150 = vmatpush.msra.mxu0 %v375
        %1151 = vmatmul.f32.gmra.mxu0 %v759
        %v1152 = vpop.f32.mrf.mxu0
        %v1153 = vadd.f32 %v1133, %v1152
        %1154 = vdwg.mxu0
        %1155 = vmatpush.msra.mxu0 %v499
        %1156 = vmatpush.msra.mxu0 %v495
        %1157 = vmatpush.msra.mxu0 %v491
        %1158 = vmatpush.msra.mxu0 %v487
        %1159 = vmatpush.msra.mxu0 %v483
        %1160 = vmatpush.msra.mxu0 %v479
        %1161 = vmatpush.msra.mxu0 %v475
        %1162 = vmatpush.msra.mxu0 %v471
        %1163 = vmatpush.msra.mxu0 %v467
        %1164 = vmatpush.msra.mxu0 %v463
        %1165 = vmatpush.msra.mxu0 %v459
        %1166 = vmatpush.msra.mxu0 %v455
        %1167 = vmatpush.msra.mxu0 %v451
        %1168 = vmatpush.msra.mxu0 %v447
        %1169 = vmatpush.msra.mxu0 %v443
        %1170 = vmatpush.msra.mxu0 %v439
        %1171 = vmatmul.f32.gmra.mxu0 %v760
        %v1172 = vpop.f32.mrf.mxu0
        %v1173 = vadd.f32 %v1153, %v1172
        %1174 = vdwg.mxu0
        %1175 = vmatpush.msra.mxu0 %v563
        %1176 = vmatpush.msra.mxu0 %v559
        %1177 = vmatpush.msra.mxu0 %v555
        %1178 = vmatpush.msra.mxu0 %v551
        %1179 = vmatpush.msra.mxu0 %v547
        %1180 = vmatpush.msra.mxu0 %v543
        %1181 = vmatpush.msra.mxu0 %v539
        %1182 = vmatpush.msra.mxu0 %v535
        %1183 = vmatpush.msra.mxu0 %v531
        %1184 = vmatpush.msra.mxu0 %v527
        %1185 = vmatpush.msra.mxu0 %v523
        %1186 = vmatpush.msra.mxu0 %v519
        %1187 = vmatpush.msra.mxu0 %v515
        %1188 = vmatpush.msra.mxu0 %v511
        %1189 = vmatpush.msra.mxu0 %v507
        %1190 = vmatpush.msra.mxu0 %v503
        %1191 = vmatmul.f32.gmra.mxu0 %v761
        %v1192 = vpop.f32.mrf.mxu0
        %v1193 = vadd.f32 %v1173, %v1192
        %1194 = vdwg.mxu0
        %1195 = vmatpush.msra.mxu0 %v627
        %1196 = vmatpush.msra.mxu0 %v623
        %1197 = vmatpush.msra.mxu0 %v619
        %1198 = vmatpush.msra.mxu0 %v615
        %1199 = vmatpush.msra.mxu0 %v611
        %1200 = vmatpush.msra.mxu0 %v607
        %1201 = vmatpush.msra.mxu0 %v603
        %1202 = vmatpush.msra.mxu0 %v599
        %1203 = vmatpush.msra.mxu0 %v595
        %1204 = vmatpush.msra.mxu0 %v591
        %1205 = vmatpush.msra.mxu0 %v587
        %1206 = vmatpush.msra.mxu0 %v583
        %1207 = vmatpush.msra.mxu0 %v579
        %1208 = vmatpush.msra.mxu0 %v575
        %1209 = vmatpush.msra.mxu0 %v571
        %1210 = vmatpush.msra.mxu0 %v567
        %1211 = vmatmul.f32.gmra.mxu0 %v762
        %v1212 = vpop.f32.mrf.mxu0
        %v1213 = vadd.f32 %v1193, %v1212
        %1214 = vdwg.mxu0
        %1215 = vmatpush.msra.mxu0 %v691
        %1216 = vmatpush.msra.mxu0 %v687
        %1217 = vmatpush.msra.mxu0 %v683
        %1218 = vmatpush.msra.mxu0 %v679
        %1219 = vmatpush.msra.mxu0 %v675
        %1220 = vmatpush.msra.mxu0 %v671
        %1221 = vmatpush.msra.mxu0 %v667
        %1222 = vmatpush.msra.mxu0 %v663
        %1223 = vmatpush.msra.mxu0 %v659
        %1224 = vmatpush.msra.mxu0 %v655
        %1225 = vmatpush.msra.mxu0 %v651
        %1226 = vmatpush.msra.mxu0 %v647
        %1227 = vmatpush.msra.mxu0 %v643
        %1228 = vmatpush.msra.mxu0 %v639
        %1229 = vmatpush.msra.mxu0 %v635
        %1230 = vmatpush.msra.mxu0 %v631
        %1231 = vmatmul.f32.gmra.mxu0 %v763
        %v1232 = vpop.f32.mrf.mxu0
        %v1233 = vadd.f32 %v1213, %v1232
        %1234 = vdwg.mxu0
        %1235 = vmatpush.msra.mxu0 %v755
        %1236 = vmatpush.msra.mxu0 %v751
        %1237 = vmatpush.msra.mxu0 %v747
        %1238 = vmatpush.msra.mxu0 %v743
        %1239 = vmatpush.msra.mxu0 %v739
        %1240 = vmatpush.msra.mxu0 %v735
        %1241 = vmatpush.msra.mxu0 %v731
        %1242 = vmatpush.msra.mxu0 %v727
        %1243 = vmatpush.msra.mxu0 %v723
        %1244 = vmatpush.msra.mxu0 %v719
        %1245 = vmatpush.msra.mxu0 %v715
        %1246 = vmatpush.msra.mxu0 %v711
        %1247 = vmatpush.msra.mxu0 %v707
        %1248 = vmatpush.msra.mxu0 %v703
        %1249 = vmatpush.msra.mxu0 %v699
        %1250 = vmatpush.msra.mxu0 %v695
        %1251 = vmatmul.f32.gmra.mxu0 %v764
        %v1252 = vpop.f32.mrf.mxu0
        %v1253 = vadd.f32 %v1233, %v1252
        %1254 = vdwg.mxu0
        %1255 = vmatpush.msra.mxu0 %v308
        %1256 = vmatpush.msra.mxu0 %v304
        %1257 = vmatpush.msra.mxu0 %v300
        %1258 = vmatpush.msra.mxu0 %v296
        %1259 = vmatpush.msra.mxu0 %v292
        %1260 = vmatpush.msra.mxu0 %v288
        %1261 = vmatpush.msra.mxu0 %v284
        %1262 = vmatpush.msra.mxu0 %v280
        %1263 = vmatpush.msra.mxu0 %v276
        %1264 = vmatpush.msra.mxu0 %v272
        %1265 = vmatpush.msra.mxu0 %v268
        %1266 = vmatpush.msra.mxu0 %v264
        %1267 = vmatpush.msra.mxu0 %v260
        %1268 = vmatpush.msra.mxu0 %v256
        %1269 = vmatpush.msra.mxu0 %v252
        %1270 = vmatpush.msra.mxu0 %v248
        %1271 = vmatmul.f32.gmra.mxu0 %v757
        %v1272 = vpop.f32.mrf.mxu0
        %v1273 = vadd.f32 %v770, %v1272
        %1274 = vdwg.mxu0
        %1275 = vmatpush.msra.mxu0 %v372
        %1276 = vmatpush.msra.mxu0 %v368
        %1277 = vmatpush.msra.mxu0 %v364
        %1278 = vmatpush.msra.mxu0 %v360
        %1279 = vmatpush.msra.mxu0 %v356
        %1280 = vmatpush.msra.mxu0 %v352
        %1281 = vmatpush.msra.mxu0 %v348
        %1282 = vmatpush.msra.mxu0 %v344
        %1283 = vmatpush.msra.mxu0 %v340
        %1284 = vmatpush.msra.mxu0 %v336
        %1285 = vmatpush.msra.mxu0 %v332
        %1286 = vmatpush.msra.mxu0 %v328
        %1287 = vmatpush.msra.mxu0 %v324
        %1288 = vmatpush.msra.mxu0 %v320
        %1289 = vmatpush.msra.mxu0 %v316
        %1290 = vmatpush.msra.mxu0 %v312
        %1291 = vmatmul.f32.gmra.mxu0 %v758
        %v1292 = vpop.f32.mrf.mxu0
        %v1293 = vadd.f32 %v1273, %v1292
        %1294 = vdwg.mxu0
        %1295 = vmatpush.msra.mxu0 %v436
        %1296 = vmatpush.msra.mxu0 %v432
        %1297 = vmatpush.msra.mxu0 %v428
        %1298 = vmatpush.msra.mxu0 %v424
        %1299 = vmatpush.msra.mxu0 %v420
        %1300 = vmatpush.msra.mxu0 %v416
        %1301 = vmatpush.msra.mxu0 %v412
        %1302 = vmatpush.msra.mxu0 %v408
        %1303 = vmatpush.msra.mxu0 %v404
        %1304 = vmatpush.msra.mxu0 %v400
        %1305 = vmatpush.msra.mxu0 %v396
        %1306 = vmatpush.msra.mxu0 %v392
        %1307 = vmatpush.msra.mxu0 %v388
        %1308 = vmatpush.msra.mxu0 %v384
        %1309 = vmatpush.msra.mxu0 %v380
        %1310 = vmatpush.msra.mxu0 %v376
        %1311 = vmatmul.f32.gmra.mxu0 %v759
        %v1312 = vpop.f32.mrf.mxu0
        %v1313 = vadd.f32 %v1293, %v1312
        %1314 = vdwg.mxu0
        %1315 = vmatpush.msra.mxu0 %v500
        %1316 = vmatpush.msra.mxu0 %v496
        %1317 = vmatpush.msra.mxu0 %v492
        %1318 = vmatpush.msra.mxu0 %v488
        %1319 = vmatpush.msra.mxu0 %v484
        %1320 = vmatpush.msra.mxu0 %v480
        %1321 = vmatpush.msra.mxu0 %v476
        %1322 = vmatpush.msra.mxu0 %v472
        %1323 = vmatpush.msra.mxu0 %v468
        %1324 = vmatpush.msra.mxu0 %v464
        %1325 = vmatpush.msra.mxu0 %v460
        %1326 = vmatpush.msra.mxu0 %v456
        %1327 = vmatpush.msra.mxu0 %v452
        %1328 = vmatpush.msra.mxu0 %v448
        %1329 = vmatpush.msra.mxu0 %v444
        %1330 = vmatpush.msra.mxu0 %v440
        %1331 = vmatmul.f32.gmra.mxu0 %v760
        %v1332 = vpop.f32.mrf.mxu0
        %v1333 = vadd.f32 %v1313, %v1332
        %1334 = vdwg.mxu0
        %1335 = vmatpush.msra.mxu0 %v564
        %1336 = vmatpush.msra.mxu0 %v560
        %1337 = vmatpush.msra.mxu0 %v556
        %1338 = vmatpush.msra.mxu0 %v552
        %1339 = vmatpush.msra.mxu0 %v548
        %1340 = vmatpush.msra.mxu0 %v544
        %1341 = vmatpush.msra.mxu0 %v540
        %1342 = vmatpush.msra.mxu0 %v536
        %1343 = vmatpush.msra.mxu0 %v532
        %1344 = vmatpush.msra.mxu0 %v528
        %1345 = vmatpush.msra.mxu0 %v524
        %1346 = vmatpush.msra.mxu0 %v520
        %1347 = vmatpush.msra.mxu0 %v516
        %1348 = vmatpush.msra.mxu0 %v512
        %1349 = vmatpush.msra.mxu0 %v508
        %1350 = vmatpush.msra.mxu0 %v504
        %1351 = vmatmul.f32.gmra.mxu0 %v761
        %v1352 = vpop.f32.mrf.mxu0
        %v1353 = vadd.f32 %v1333, %v1352
        %1354 = vdwg.mxu0
        %1355 = vmatpush.msra.mxu0 %v628
        %1356 = vmatpush.msra.mxu0 %v624
        %1357 = vmatpush.msra.mxu0 %v620
        %1358 = vmatpush.msra.mxu0 %v616
        %1359 = vmatpush.msra.mxu0 %v612
        %1360 = vmatpush.msra.mxu0 %v608
        %1361 = vmatpush.msra.mxu0 %v604
        %1362 = vmatpush.msra.mxu0 %v600
        %1363 = vmatpush.msra.mxu0 %v596
        %1364 = vmatpush.msra.mxu0 %v592
        %1365 = vmatpush.msra.mxu0 %v588
        %1366 = vmatpush.msra.mxu0 %v584
        %1367 = vmatpush.msra.mxu0 %v580
        %1368 = vmatpush.msra.mxu0 %v576
        %1369 = vmatpush.msra.mxu0 %v572
        %1370 = vmatpush.msra.mxu0 %v568
        %1371 = vmatmul.f32.gmra.mxu0 %v762
        %v1372 = vpop.f32.mrf.mxu0
        %v1373 = vadd.f32 %v1353, %v1372
        %1374 = vdwg.mxu0
        %1375 = vmatpush.msra.mxu0 %v692
        %1376 = vmatpush.msra.mxu0 %v688
        %1377 = vmatpush.msra.mxu0 %v684
        %1378 = vmatpush.msra.mxu0 %v680
        %1379 = vmatpush.msra.mxu0 %v676
        %1380 = vmatpush.msra.mxu0 %v672
        %1381 = vmatpush.msra.mxu0 %v668
        %1382 = vmatpush.msra.mxu0 %v664
        %1383 = vmatpush.msra.mxu0 %v660
        %1384 = vmatpush.msra.mxu0 %v656
        %1385 = vmatpush.msra.mxu0 %v652
        %1386 = vmatpush.msra.mxu0 %v648
        %1387 = vmatpush.msra.mxu0 %v644
        %1388 = vmatpush.msra.mxu0 %v640
        %1389 = vmatpush.msra.mxu0 %v636
        %1390 = vmatpush.msra.mxu0 %v632
        %1391 = vmatmul.f32.gmra.mxu0 %v763
        %v1392 = vpop.f32.mrf.mxu0
        %v1393 = vadd.f32 %v1373, %v1392
        %1394 = vdwg.mxu0
        %1395 = vmatpush.msra.mxu0 %v756
        %1396 = vmatpush.msra.mxu0 %v752
        %1397 = vmatpush.msra.mxu0 %v748
        %1398 = vmatpush.msra.mxu0 %v744
        %1399 = vmatpush.msra.mxu0 %v740
        %1400 = vmatpush.msra.mxu0 %v736
        %1401 = vmatpush.msra.mxu0 %v732
        %1402 = vmatpush.msra.mxu0 %v728
        %1403 = vmatpush.msra.mxu0 %v724
        %1404 = vmatpush.msra.mxu0 %v720
        %1405 = vmatpush.msra.mxu0 %v716
        %1406 = vmatpush.msra.mxu0 %v712
        %1407 = vmatpush.msra.mxu0 %v708
        %1408 = vmatpush.msra.mxu0 %v704
        %1409 = vmatpush.msra.mxu0 %v700
        %1410 = vmatpush.msra.mxu0 %v696
        %1411 = vmatmul.f32.gmra.mxu0 %v764
        %v1412 = vpop.f32.mrf.mxu0
        %v1413 = vadd.f32 %v1393, %v1412
        %1414 = vdwg.mxu0
        %v1415 = vmax.f32 %v933, -10.0
        %v1416 = vmax.f32 %v1093, -10.0
        %v1417 = vmax.f32 %v1253, -10.0
        %v1418 = vmax.f32 %v1413, -10.0
        %v1419 = vmin.f32 %v1415, 10.0
        %v1420 = vmin.f32 %v1416, 10.0
        %v1421 = vmin.f32 %v1417, 10.0
        %v1422 = vmin.f32 %v1418, 10.0
        %1423 = vst [vmem:[%s241] sm:$0xff] %v1419
        %1424 = vst [vmem:[%s241 + $0x8] sm:$0xff] %v1420
        %1425 = vst [vmem:[%s241 + $0x10] sm:$0xff] %v1421
        %1426 = vst [vmem:[%s241 + $0x18] sm:$0xff] %v1422
        %s1427 = sand.u32 %s102, 1
        %s1428 = scalar_lea.sflag [#allocation4], %s1427
        %s1429 = sand.u32 %s102, 1
        %s1430 = smul.addr %s1429, 32
        %s1431 = scalar_lea.vmem [#allocation8], %s1430
        // Predicated region
        $region45: #{tpu_custom_call.1} parent=31 // pred_check
          %p1432 = pneg %p112
        $region46: #{tpu_custom_call.1} parent=31 // pred_check_branch
          %1434 = sbr.rel (%p1432) target = $region48
        $region47: #{tpu_custom_call.1} parent=31 // pred_region
          %s1435 = smul.u32 4, %s21
          %1437 = vsyncadd %s1428, 0
          %s1438 = smul.addr %s1435, 8
          %s1439 = scalar_lea.hbm %s3, %s1438
          %s1441 = sshll.u32 %s1431, 4
          %s1442 = int_to_ptr.vmem [resolvable:$true] %s1441
          %s1443 = sshll.u32 %s1439, 4
          %s1444 = int_to_ptr.hbm [resolvable:$true] %s1443
          %1446 = dma.vmem_to_hbm [thread:$0]  %s1442, 512, %s1444, %s1428
        $region48: #{tpu_custom_call.1} parent=31 // pred_fallthru
          _
      $region32: #{tpu_custom_call.1} parent=5 // pred_fallthru
        _
      %p1447 = scmp.le.s32.totalorder 2, %s16
      // Predicated region
      $region49: #{tpu_custom_call.1} parent=5 // pred_check
        %p1448 = pneg %p1447
      $region50: #{tpu_custom_call.1} parent=5 // pred_check_branch
        %1450 = sbr.rel (%p1448) target = $region52
      $region51: #{tpu_custom_call.1} parent=5 // pred_region
        %s1451 = ssub.s32 %s16, 2
        // Predicated region
        $region53: #{tpu_custom_call.1} parent=51 // pred_check
          %p1452 = pneg %p118
        $region54: #{tpu_custom_call.1} parent=51 // pred_check_branch
          %1454 = sbr.rel (%p1452) target = $region56
        $region55: #{tpu_custom_call.1} parent=51 // pred_region
          %s1455 = sand.u32 %s103, 1
          %s1456 = scalar_lea.sflag [#allocation4], %s1455
          %s1457 = sand.u32 %s103, 1
          %s1458 = smul.addr %s1457, 32
          %s1459 = scalar_lea.vmem [#allocation8], %s1458
          %1461 = dma.done %s1456, 512
        $region56: #{tpu_custom_call.1} parent=51 // pred_fallthru
          _
      $region52: #{tpu_custom_call.1} parent=5 // pred_fallthru
        _
    $region6: #{tpu_custom_call.1} parent=1 // loop_footer
      %s20 = sadd.s32 1, %s16
    $region7: #{tpu_custom_call.1} parent=1 // loop_footer_branch
      %15 = sbr.rel target = $region3
    $region8: #{tpu_custom_call.1} parent=1 // loop_exit
      _
    %1462 = vsyncpa [#allocation3], 1
    %s1463 = scalar_lea.sflag [#allocation3], 1
    %1464 = vsyncpa %s1463, 1
    %1465 = vsyncpa [#allocation6], 1
    %s1466 = scalar_lea.sflag [#allocation6], 1
    %1467 = vsyncpa %s1466, 1
    %1468 = vsyncpa [#allocation4], 1
    %s1469 = scalar_lea.sflag [#allocation4], 1
    %1470 = vsyncpa %s1469, 1

</llo_original>
